<compile_context>
chip_gen: v7x
topology: tpu7x:2x2x1
jax: 0.10.0
libtpu: 0.0.40
codegen_flags: <defaults>
</compile_context>

<pallas_src>
import functools

import jax
import jax.numpy as jnp
from jax.experimental import pallas as pl
from jax.experimental.pallas import tpu as pltpu


def _gru_linear_kernel(x_ref, h0_ref, wih_ref, whh_ref, bgi_ref, bhn_ref,
                       wout_ref, bout_ref, out_ref, hout_ref, h_all_ref,
                       *, seq_len, batch, hidden_size):
    T, B, H = seq_len, batch, hidden_size

    # ---- Hoisted input projection for ALL timesteps (one MXU launch) ----
    # (T*B, N) @ (N, 3H) + (1, 3H) -> (T*B, 3H)
    gi_all = (jnp.dot(x_ref[...], wih_ref[...],
                      preferred_element_type=jnp.float32) + bgi_ref[...])

    whh = whh_ref[...]          # (H, 3H), resident across the unrolled loop
    bhn = bhn_ref[...]          # (1, H): hidden bias of the n gate (inside r * (...))

    # ---- Sequential recurrence, fully unrolled; h carried in vregs ----
    h = h0_ref[...]             # (B, H)
    for t in range(T):          # static trip count -> fully unrolled, LLO-visible
        gi = gi_all[t * B:(t + 1) * B, :]                             # (B, 3H)
        gh = jnp.dot(h, whh, preferred_element_type=jnp.float32)      # (B, 3H)
        r = jax.nn.sigmoid(gi[:, 0 * H:1 * H] + gh[:, 0 * H:1 * H])
        z = jax.nn.sigmoid(gi[:, 1 * H:2 * H] + gh[:, 1 * H:2 * H])
        n = jnp.tanh(gi[:, 2 * H:3 * H] + r * (gh[:, 2 * H:3 * H] + bhn))
        h = (1.0 - z) * n + z * h
        h_all_ref[t * B:(t + 1) * B, :] = h                            # off critical chain

    # ---- Deferred output Linear: one (T*B, H) x (H, O) matmul + one dense store ----
    y = jnp.dot(h_all_ref[...], wout_ref[...],
                preferred_element_type=jnp.float32) + bout_ref[...]
    out_ref[...] = y.astype(out_ref.dtype)
    hout_ref[...] = h.astype(hout_ref.dtype)


def generator_forward(noise, hidden, params):
    """noise: (B, T, N), hidden: (1, B, H). Returns (output (B, T, O), hidden (1, B, H))."""
    w_ih, w_hh, b_ih, b_hh, w_out, b_out = (
        params["w_ih"], params["w_hh"], params["b_ih"], params["b_hh"],
        params["w_out"], params["b_out"])

    B, T, N = noise.shape
    H = w_hh.shape[0]
    O = w_out.shape[1]

    # Time-major flattening: row t*B + b  <->  (timestep t, batch b).
    x_flat = jnp.transpose(noise, (1, 0, 2)).reshape(T * B, N).astype(jnp.float32)
    h0 = hidden[0].astype(jnp.float32)                                # (B, H)

    # Fold b_hh's r/z parts into the hoisted projection bias; the n-gate hidden bias
    # must stay inside r * (h @ W_hn + b_hn), so it is passed separately.
    b_gi = (b_ih + jnp.concatenate([b_hh[:2 * H], jnp.zeros((H,), b_hh.dtype)])
            ).reshape(1, 3 * H).astype(jnp.float32)
    b_hn = b_hh[2 * H:].reshape(1, H).astype(jnp.float32)
    b_out2 = b_out.reshape(1, O).astype(jnp.float32)

    kernel = functools.partial(_gru_linear_kernel, seq_len=T, batch=B, hidden_size=H)

    out_flat, h_final = pl.pallas_call(
        kernel,
        out_shape=(jax.ShapeDtypeStruct((T * B, O), jnp.float32),
                   jax.ShapeDtypeStruct((B, H), jnp.float32)),
        grid_spec=pltpu.PrefetchScalarGridSpec(
            num_scalar_prefetch=0,
            grid=(1,),                                                # single kernel invocation
            in_specs=[
                pl.BlockSpec((T * B, N), lambda i: (0, 0)),           # flattened noise
                pl.BlockSpec((B, H), lambda i: (0, 0)),               # h0
                pl.BlockSpec((N, 3 * H), lambda i: (0, 0)),           # w_ih (pre-transposed)
                pl.BlockSpec((H, 3 * H), lambda i: (0, 0)),           # w_hh (pre-transposed)
                pl.BlockSpec((1, 3 * H), lambda i: (0, 0)),           # folded gi bias
                pl.BlockSpec((1, H), lambda i: (0, 0)),               # b_hn
                pl.BlockSpec((H, O), lambda i: (0, 0)),               # w_out (pre-transposed)
                pl.BlockSpec((1, O), lambda i: (0, 0)),               # b_out
            ],
            out_specs=[
                pl.BlockSpec((T * B, O), lambda i: (0, 0)),           # lane-dense output slab
                pl.BlockSpec((B, H), lambda i: (0, 0)),               # final hidden
            ],
            scratch_shapes=[pltpu.VMEM((T * B, H), jnp.float32)],      # stacked hidden states
        ),
        compiler_params=pltpu.CompilerParams(
            dimension_semantics=("arbitrary",)),
    )(x_flat, h0, w_ih.astype(jnp.float32), w_hh.astype(jnp.float32),
      b_gi, b_hn, w_out.astype(jnp.float32), b_out2)

    output = jnp.transpose(out_flat.reshape(T, B, O), (1, 0, 2))      # (B, T, O)
    return output, h_final[None]                                      # hidden -> (1, B, H)


def _reference_forward(noise, hidden, params):
    """Pure-JAX reference of the same GRU + Linear (PyTorch semantics)."""
    w_ih, w_hh, b_ih, b_hh, w_out, b_out = (
        params["w_ih"], params["w_hh"], params["b_ih"], params["b_hh"],
        params["w_out"], params["b_out"])
    H = w_hh.shape[0]

    def step(h, x):
        gi = x @ w_ih + b_ih
        gh = h @ w_hh + b_hh
        r = jax.nn.sigmoid(gi[:, :H] + gh[:, :H])
        z = jax.nn.sigmoid(gi[:, H:2 * H] + gh[:, H:2 * H])
        n = jnp.tanh(gi[:, 2 * H:] + r * gh[:, 2 * H:])
        h_new = (1.0 - z) * n + z * h
        return h_new, h_new

    x_tm = jnp.transpose(noise, (1, 0, 2))
    h_final, hs = jax.lax.scan(step, hidden[0], x_tm)
    out = jnp.einsum("tbh,ho->tbo", hs, w_out) + b_out
    return jnp.transpose(out, (1, 0, 2)), h_final[None]


def init_params(key, noise_size, hidden_size, output_size):
    """Deterministic init mirroring PyTorch shapes (stored pre-transposed for x @ W)."""
    k = jax.random.split(key, 6)
    s = 1.0 / jnp.sqrt(hidden_size)
    return {
        # PyTorch weight_ih_l0 is (3H, N); we store the transpose (N, 3H).
        "w_ih": jax.random.uniform(k[0], (noise_size, 3 * hidden_size), jnp.float32, -s, s),
        "w_hh": jax.random.uniform(k[1], (hidden_size, 3 * hidden_size), jnp.float32, -s, s),
        "b_ih": jax.random.uniform(k[2], (3 * hidden_size,), jnp.float32, -s, s),
        "b_hh": jax.random.uniform(k[3], (3 * hidden_size,), jnp.float32, -s, s),
        # PyTorch Linear weight is (O, H); we store the transpose (H, O).
        "w_out": jax.random.uniform(k[4], (hidden_size, output_size), jnp.float32, -s, s),
        "b_out": jax.random.uniform(k[5], (output_size,), jnp.float32, -s, s),
    }


if __name__ == "__main__":
    # Module defaults (kept small): noise_size=100, hidden_sizes=[64], output_size=128.
    B, T, N, H, O = 2, 8, 100, 64, 128

    key = jax.random.PRNGKey(0)
    k_noise, k_params = jax.random.split(key)
    noise = jax.random.normal(k_noise, (B, T, N), jnp.float32)
    hidden0 = jnp.zeros((1, B, H), jnp.float32)   # Generator.initHidden
    params = init_params(k_params, N, H, O)

    out, h_fin = generator_forward(noise, hidden0, params)
    out = jax.block_until_ready(out)
    h_fin = jax.block_until_ready(h_fin)

    ref_out, ref_h = _reference_forward(noise, hidden0, params)
    assert out.shape == (B, T, O) and h_fin.shape == (1, B, H)
    assert jnp.allclose(out, ref_out, atol=1e-4, rtol=1e-4)
    assert jnp.allclose(h_fin, ref_h, atol=1e-4, rtol=1e-4)

    print("KERNEL_OK")
</pallas_src>

<mosaic_0001>
module attributes {stable_mosaic.version = 11 : i64} {
  func.func @_gru_linear_kernel(%arg0: i32, %arg1: memref<16x100xf32, #tpu.memory_space<vmem>>, %arg2: memref<2x64xf32, #tpu.memory_space<vmem>>, %arg3: memref<100x192xf32, #tpu.memory_space<vmem>>, %arg4: memref<64x192xf32, #tpu.memory_space<vmem>>, %arg5: memref<1x192xf32, #tpu.memory_space<vmem>>, %arg6: memref<1x64xf32, #tpu.memory_space<vmem>>, %arg7: memref<64x128xf32, #tpu.memory_space<vmem>>, %arg8: memref<1x128xf32, #tpu.memory_space<vmem>>, %arg9: memref<16x128xf32, #tpu.memory_space<vmem>>, %arg10: memref<2x64xf32, #tpu.memory_space<vmem>>, %arg11: memref<16x64xf32, #tpu.memory_space<vmem>>) attributes {dimension_semantics = [#tpu.dimension_semantics<arbitrary>], iteration_bounds = array<i64: 1>, scalar_prefetch = 0 : i64, scratch_operands = 1 : i64, tpu.core_type = #tpu.core_type<tc>, window_params = [{pipeline_mode = #tpu.pipeline_mode<synchronous>, transform_indices = @transform_0, window_bounds = array<i64: 16, 100>}, {pipeline_mode = #tpu.pipeline_mode<synchronous>, transform_indices = @transform_1, window_bounds = array<i64: 2, 64>}, {pipeline_mode = #tpu.pipeline_mode<synchronous>, transform_indices = @transform_2, window_bounds = array<i64: 100, 192>}, {pipeline_mode = #tpu.pipeline_mode<synchronous>, transform_indices = @transform_3, window_bounds = array<i64: 64, 192>}, {pipeline_mode = #tpu.pipeline_mode<synchronous>, transform_indices = @transform_4, window_bounds = array<i64: 1, 192>}, {pipeline_mode = #tpu.pipeline_mode<synchronous>, transform_indices = @transform_5, window_bounds = array<i64: 1, 64>}, {pipeline_mode = #tpu.pipeline_mode<synchronous>, transform_indices = @transform_6, window_bounds = array<i64: 64, 128>}, {pipeline_mode = #tpu.pipeline_mode<synchronous>, transform_indices = @transform_7, window_bounds = array<i64: 1, 128>}, {pipeline_mode = #tpu.pipeline_mode<synchronous>, transform_indices = @transform_8, window_bounds = array<i64: 16, 128>}, {pipeline_mode = #tpu.pipeline_mode<synchronous>, transform_indices = @transform_9, window_bounds = array<i64: 2, 64>}]} {
    %c0 = arith.constant 0 : index
    %c0_0 = arith.constant 0 : index
    %0 = vector.load %arg1[%c0, %c0_0] : memref<16x100xf32, #tpu.memory_space<vmem>>, vector<16x100xf32>
    %c0_1 = arith.constant 0 : index
    %c0_2 = arith.constant 0 : index
    %1 = vector.load %arg3[%c0_1, %c0_2] : memref<100x192xf32, #tpu.memory_space<vmem>>, vector<100x192xf32>
    %cst = arith.constant dense<0.000000e+00> : vector<16x192xf32>
    %2 = tpu.matmul %0, %1, %cst {dimension_numbers = #tpu.dot_dimension_numbers<[1], [0], [0], [1], [0, 0, 1, 1], [], []>} : vector<16x100xf32>, vector<100x192xf32>, vector<16x192xf32> -> vector<16x192xf32>
    %c0_3 = arith.constant 0 : index
    %c0_4 = arith.constant 0 : index
    %3 = vector.load %arg5[%c0_3, %c0_4] : memref<1x192xf32, #tpu.memory_space<vmem>>, vector<1x192xf32>
    %4 = vector.broadcast %3 : vector<1x192xf32> to vector<16x192xf32>
    %5 = arith.addf %2, %4 : vector<16x192xf32>
    %c0_5 = arith.constant 0 : index
    %c0_6 = arith.constant 0 : index
    %6 = vector.load %arg4[%c0_5, %c0_6] : memref<64x192xf32, #tpu.memory_space<vmem>>, vector<64x192xf32>
    %c0_7 = arith.constant 0 : index
    %c0_8 = arith.constant 0 : index
    %7 = vector.load %arg6[%c0_7, %c0_8] : memref<1x64xf32, #tpu.memory_space<vmem>>, vector<1x64xf32>
    %c0_9 = arith.constant 0 : index
    %c0_10 = arith.constant 0 : index
    %8 = vector.load %arg2[%c0_9, %c0_10] : memref<2x64xf32, #tpu.memory_space<vmem>>, vector<2x64xf32>
    %9 = vector.extract_strided_slice %5 {offsets = [0, 0], sizes = [2, 192], strides = [1, 1]} : vector<16x192xf32> to vector<2x192xf32>
    %cst_11 = arith.constant dense<0.000000e+00> : vector<2x192xf32>
    %10 = tpu.matmul %8, %6, %cst_11 {dimension_numbers = #tpu.dot_dimension_numbers<[1], [0], [0], [1], [0, 0, 1, 1], [], []>} : vector<2x64xf32>, vector<64x192xf32>, vector<2x192xf32> -> vector<2x192xf32>
    %11 = vector.extract_strided_slice %9 {offsets = [0, 0], sizes = [2, 64], strides = [1, 1]} : vector<2x192xf32> to vector<2x64xf32>
    %12 = vector.extract_strided_slice %10 {offsets = [0, 0], sizes = [2, 64], strides = [1, 1]} : vector<2x192xf32> to vector<2x64xf32>
    %13 = arith.addf %11, %12 : vector<2x64xf32>
    %14 = arith.negf %13 : vector<2x64xf32>
    %15 = math.exp %14 : vector<2x64xf32>
    %cst_12 = arith.constant 1.000000e+00 : f32
    %16 = vector.broadcast %cst_12 : f32 to vector<2x64xf32>
    %17 = arith.addf %16, %15 : vector<2x64xf32>
    %18 = arith.divf %16, %17 : vector<2x64xf32>
    %19 = vector.extract_strided_slice %9 {offsets = [0, 64], sizes = [2, 64], strides = [1, 1]} : vector<2x192xf32> to vector<2x64xf32>
    %20 = vector.extract_strided_slice %10 {offsets = [0, 64], sizes = [2, 64], strides = [1, 1]} : vector<2x192xf32> to vector<2x64xf32>
    %21 = arith.addf %19, %20 : vector<2x64xf32>
    %22 = arith.negf %21 : vector<2x64xf32>
    %23 = math.exp %22 : vector<2x64xf32>
    %cst_13 = arith.constant 1.000000e+00 : f32
    %24 = vector.broadcast %cst_13 : f32 to vector<2x64xf32>
    %25 = arith.addf %24, %23 : vector<2x64xf32>
    %26 = arith.divf %24, %25 : vector<2x64xf32>
    %27 = vector.extract_strided_slice %9 {offsets = [0, 128], sizes = [2, 64], strides = [1, 1]} : vector<2x192xf32> to vector<2x64xf32>
    %28 = vector.extract_strided_slice %10 {offsets = [0, 128], sizes = [2, 64], strides = [1, 1]} : vector<2x192xf32> to vector<2x64xf32>
    %29 = vector.broadcast %7 : vector<1x64xf32> to vector<2x64xf32>
    %30 = arith.addf %28, %29 : vector<2x64xf32>
    %31 = arith.mulf %18, %30 : vector<2x64xf32>
    %32 = arith.addf %27, %31 : vector<2x64xf32>
    %33 = math.tanh %32 : vector<2x64xf32>
    %cst_14 = arith.constant 1.000000e+00 : f32
    %34 = vector.broadcast %cst_14 : f32 to vector<2x64xf32>
    %35 = arith.subf %34, %26 : vector<2x64xf32>
    %36 = arith.mulf %35, %33 : vector<2x64xf32>
    %37 = arith.mulf %26, %8 : vector<2x64xf32>
    %38 = arith.addf %36, %37 : vector<2x64xf32>
    %c0_15 = arith.constant 0 : index
    %c0_16 = arith.constant 0 : index
    %39 = vector.load %arg11[%c0_15, %c0_16] : memref<16x64xf32, #tpu.memory_space<vmem>>, vector<2x64xf32>
    tpu.vector_store %arg11[%c0_15, %c0_16], %38 {strides = array<i32>} : memref<16x64xf32, #tpu.memory_space<vmem>>, vector<2x64xf32>,
    %40 = vector.extract_strided_slice %5 {offsets = [2, 0], sizes = [2, 192], strides = [1, 1]} : vector<16x192xf32> to vector<2x192xf32>
    %cst_17 = arith.constant dense<0.000000e+00> : vector<2x192xf32>
    %41 = tpu.matmul %38, %6, %cst_17 {dimension_numbers = #tpu.dot_dimension_numbers<[1], [0], [0], [1], [0, 0, 1, 1], [], []>} : vector<2x64xf32>, vector<64x192xf32>, vector<2x192xf32> -> vector<2x192xf32>
    %42 = vector.extract_strided_slice %40 {offsets = [0, 0], sizes = [2, 64], strides = [1, 1]} : vector<2x192xf32> to vector<2x64xf32>
    %43 = vector.extract_strided_slice %41 {offsets = [0, 0], sizes = [2, 64], strides = [1, 1]} : vector<2x192xf32> to vector<2x64xf32>
    %44 = arith.addf %42, %43 : vector<2x64xf32>
    %45 = arith.negf %44 : vector<2x64xf32>
    %46 = math.exp %45 : vector<2x64xf32>
    %cst_18 = arith.constant 1.000000e+00 : f32
    %47 = vector.broadcast %cst_18 : f32 to vector<2x64xf32>
    %48 = arith.addf %47, %46 : vector<2x64xf32>
    %49 = arith.divf %47, %48 : vector<2x64xf32>
    %50 = vector.extract_strided_slice %40 {offsets = [0, 64], sizes = [2, 64], strides = [1, 1]} : vector<2x192xf32> to vector<2x64xf32>
    %51 = vector.extract_strided_slice %41 {offsets = [0, 64], sizes = [2, 64], strides = [1, 1]} : vector<2x192xf32> to vector<2x64xf32>
    %52 = arith.addf %50, %51 : vector<2x64xf32>
    %53 = arith.negf %52 : vector<2x64xf32>
    %54 = math.exp %53 : vector<2x64xf32>
    %cst_19 = arith.constant 1.000000e+00 : f32
    %55 = vector.broadcast %cst_19 : f32 to vector<2x64xf32>
    %56 = arith.addf %55, %54 : vector<2x64xf32>
    %57 = arith.divf %55, %56 : vector<2x64xf32>
    %58 = vector.extract_strided_slice %40 {offsets = [0, 128], sizes = [2, 64], strides = [1, 1]} : vector<2x192xf32> to vector<2x64xf32>
    %59 = vector.extract_strided_slice %41 {offsets = [0, 128], sizes = [2, 64], strides = [1, 1]} : vector<2x192xf32> to vector<2x64xf32>
    %60 = vector.broadcast %7 : vector<1x64xf32> to vector<2x64xf32>
    %61 = arith.addf %59, %60 : vector<2x64xf32>
    %62 = arith.mulf %49, %61 : vector<2x64xf32>
    %63 = arith.addf %58, %62 : vector<2x64xf32>
    %64 = math.tanh %63 : vector<2x64xf32>
    %cst_20 = arith.constant 1.000000e+00 : f32
    %65 = vector.broadcast %cst_20 : f32 to vector<2x64xf32>
    %66 = arith.subf %65, %57 : vector<2x64xf32>
    %67 = arith.mulf %66, %64 : vector<2x64xf32>
    %68 = arith.mulf %57, %38 : vector<2x64xf32>
    %69 = arith.addf %67, %68 : vector<2x64xf32>
    %c2 = arith.constant 2 : index
    %c0_21 = arith.constant 0 : index
    %70 = vector.load %arg11[%c2, %c0_21] : memref<16x64xf32, #tpu.memory_space<vmem>>, vector<2x64xf32>
    tpu.vector_store %arg11[%c2, %c0_21], %69 {strides = array<i32>} : memref<16x64xf32, #tpu.memory_space<vmem>>, vector<2x64xf32>,
    %71 = vector.extract_strided_slice %5 {offsets = [4, 0], sizes = [2, 192], strides = [1, 1]} : vector<16x192xf32> to vector<2x192xf32>
    %cst_22 = arith.constant dense<0.000000e+00> : vector<2x192xf32>
    %72 = tpu.matmul %69, %6, %cst_22 {dimension_numbers = #tpu.dot_dimension_numbers<[1], [0], [0], [1], [0, 0, 1, 1], [], []>} : vector<2x64xf32>, vector<64x192xf32>, vector<2x192xf32> -> vector<2x192xf32>
    %73 = vector.extract_strided_slice %71 {offsets = [0, 0], sizes = [2, 64], strides = [1, 1]} : vector<2x192xf32> to vector<2x64xf32>
    %74 = vector.extract_strided_slice %72 {offsets = [0, 0], sizes = [2, 64], strides = [1, 1]} : vector<2x192xf32> to vector<2x64xf32>
    %75 = arith.addf %73, %74 : vector<2x64xf32>
    %76 = arith.negf %75 : vector<2x64xf32>
    %77 = math.exp %76 : vector<2x64xf32>
    %cst_23 = arith.constant 1.000000e+00 : f32
    %78 = vector.broadcast %cst_23 : f32 to vector<2x64xf32>
    %79 = arith.addf %78, %77 : vector<2x64xf32>
    %80 = arith.divf %78, %79 : vector<2x64xf32>
    %81 = vector.extract_strided_slice %71 {offsets = [0, 64], sizes = [2, 64], strides = [1, 1]} : vector<2x192xf32> to vector<2x64xf32>
    %82 = vector.extract_strided_slice %72 {offsets = [0, 64], sizes = [2, 64], strides = [1, 1]} : vector<2x192xf32> to vector<2x64xf32>
    %83 = arith.addf %81, %82 : vector<2x64xf32>
    %84 = arith.negf %83 : vector<2x64xf32>
    %85 = math.exp %84 : vector<2x64xf32>
    %cst_24 = arith.constant 1.000000e+00 : f32
    %86 = vector.broadcast %cst_24 : f32 to vector<2x64xf32>
    %87 = arith.addf %86, %85 : vector<2x64xf32>
    %88 = arith.divf %86, %87 : vector<2x64xf32>
    %89 = vector.extract_strided_slice %71 {offsets = [0, 128], sizes = [2, 64], strides = [1, 1]} : vector<2x192xf32> to vector<2x64xf32>
    %90 = vector.extract_strided_slice %72 {offsets = [0, 128], sizes = [2, 64], strides = [1, 1]} : vector<2x192xf32> to vector<2x64xf32>
    %91 = vector.broadcast %7 : vector<1x64xf32> to vector<2x64xf32>
    %92 = arith.addf %90, %91 : vector<2x64xf32>
    %93 = arith.mulf %80, %92 : vector<2x64xf32>
    %94 = arith.addf %89, %93 : vector<2x64xf32>
    %95 = math.tanh %94 : vector<2x64xf32>
    %cst_25 = arith.constant 1.000000e+00 : f32
    %96 = vector.broadcast %cst_25 : f32 to vector<2x64xf32>
    %97 = arith.subf %96, %88 : vector<2x64xf32>
    %98 = arith.mulf %97, %95 : vector<2x64xf32>
    %99 = arith.mulf %88, %69 : vector<2x64xf32>
    %100 = arith.addf %98, %99 : vector<2x64xf32>
    %c4 = arith.constant 4 : index
    %c0_26 = arith.constant 0 : index
    %101 = vector.load %arg11[%c4, %c0_26] : memref<16x64xf32, #tpu.memory_space<vmem>>, vector<2x64xf32>
    tpu.vector_store %arg11[%c4, %c0_26], %100 {strides = array<i32>} : memref<16x64xf32, #tpu.memory_space<vmem>>, vector<2x64xf32>,
    %102 = vector.extract_strided_slice %5 {offsets = [6, 0], sizes = [2, 192], strides = [1, 1]} : vector<16x192xf32> to vector<2x192xf32>
    %cst_27 = arith.constant dense<0.000000e+00> : vector<2x192xf32>
    %103 = tpu.matmul %100, %6, %cst_27 {dimension_numbers = #tpu.dot_dimension_numbers<[1], [0], [0], [1], [0, 0, 1, 1], [], []>} : vector<2x64xf32>, vector<64x192xf32>, vector<2x192xf32> -> vector<2x192xf32>
    %104 = vector.extract_strided_slice %102 {offsets = [0, 0], sizes = [2, 64], strides = [1, 1]} : vector<2x192xf32> to vector<2x64xf32>
    %105 = vector.extract_strided_slice %103 {offsets = [0, 0], sizes = [2, 64], strides = [1, 1]} : vector<2x192xf32> to vector<2x64xf32>
    %106 = arith.addf %104, %105 : vector<2x64xf32>
    %107 = arith.negf %106 : vector<2x64xf32>
    %108 = math.exp %107 : vector<2x64xf32>
    %cst_28 = arith.constant 1.000000e+00 : f32
    %109 = vector.broadcast %cst_28 : f32 to vector<2x64xf32>
    %110 = arith.addf %109, %108 : vector<2x64xf32>
    %111 = arith.divf %109, %110 : vector<2x64xf32>
    %112 = vector.extract_strided_slice %102 {offsets = [0, 64], sizes = [2, 64], strides = [1, 1]} : vector<2x192xf32> to vector<2x64xf32>
    %113 = vector.extract_strided_slice %103 {offsets = [0, 64], sizes = [2, 64], strides = [1, 1]} : vector<2x192xf32> to vector<2x64xf32>
    %114 = arith.addf %112, %113 : vector<2x64xf32>
    %115 = arith.negf %114 : vector<2x64xf32>
    %116 = math.exp %115 : vector<2x64xf32>
    %cst_29 = arith.constant 1.000000e+00 : f32
    %117 = vector.broadcast %cst_29 : f32 to vector<2x64xf32>
    %118 = arith.addf %117, %116 : vector<2x64xf32>
    %119 = arith.divf %117, %118 : vector<2x64xf32>
    %120 = vector.extract_strided_slice %102 {offsets = [0, 128], sizes = [2, 64], strides = [1, 1]} : vector<2x192xf32> to vector<2x64xf32>
    %121 = vector.extract_strided_slice %103 {offsets = [0, 128], sizes = [2, 64], strides = [1, 1]} : vector<2x192xf32> to vector<2x64xf32>
    %122 = vector.broadcast %7 : vector<1x64xf32> to vector<2x64xf32>
    %123 = arith.addf %121, %122 : vector<2x64xf32>
    %124 = arith.mulf %111, %123 : vector<2x64xf32>
    %125 = arith.addf %120, %124 : vector<2x64xf32>
    %126 = math.tanh %125 : vector<2x64xf32>
    %cst_30 = arith.constant 1.000000e+00 : f32
    %127 = vector.broadcast %cst_30 : f32 to vector<2x64xf32>
    %128 = arith.subf %127, %119 : vector<2x64xf32>
    %129 = arith.mulf %128, %126 : vector<2x64xf32>
    %130 = arith.mulf %119, %100 : vector<2x64xf32>
    %131 = arith.addf %129, %130 : vector<2x64xf32>
    %c6 = arith.constant 6 : index
    %c0_31 = arith.constant 0 : index
    %132 = vector.load %arg11[%c6, %c0_31] : memref<16x64xf32, #tpu.memory_space<vmem>>, vector<2x64xf32>
    tpu.vector_store %arg11[%c6, %c0_31], %131 {strides = array<i32>} : memref<16x64xf32, #tpu.memory_space<vmem>>, vector<2x64xf32>,
    %133 = vector.extract_strided_slice %5 {offsets = [8, 0], sizes = [2, 192], strides = [1, 1]} : vector<16x192xf32> to vector<2x192xf32>
    %cst_32 = arith.constant dense<0.000000e+00> : vector<2x192xf32>
    %134 = tpu.matmul %131, %6, %cst_32 {dimension_numbers = #tpu.dot_dimension_numbers<[1], [0], [0], [1], [0, 0, 1, 1], [], []>} : vector<2x64xf32>, vector<64x192xf32>, vector<2x192xf32> -> vector<2x192xf32>
    %135 = vector.extract_strided_slice %133 {offsets = [0, 0], sizes = [2, 64], strides = [1, 1]} : vector<2x192xf32> to vector<2x64xf32>
    %136 = vector.extract_strided_slice %134 {offsets = [0, 0], sizes = [2, 64], strides = [1, 1]} : vector<2x192xf32> to vector<2x64xf32>
    %137 = arith.addf %135, %136 : vector<2x64xf32>
    %138 = arith.negf %137 : vector<2x64xf32>
    %139 = math.exp %138 : vector<2x64xf32>
    %cst_33 = arith.constant 1.000000e+00 : f32
    %140 = vector.broadcast %cst_33 : f32 to vector<2x64xf32>
    %141 = arith.addf %140, %139 : vector<2x64xf32>
    %142 = arith.divf %140, %141 : vector<2x64xf32>
    %143 = vector.extract_strided_slice %133 {offsets = [0, 64], sizes = [2, 64], strides = [1, 1]} : vector<2x192xf32> to vector<2x64xf32>
    %144 = vector.extract_strided_slice %134 {offsets = [0, 64], sizes = [2, 64], strides = [1, 1]} : vector<2x192xf32> to vector<2x64xf32>
    %145 = arith.addf %143, %144 : vector<2x64xf32>
    %146 = arith.negf %145 : vector<2x64xf32>
    %147 = math.exp %146 : vector<2x64xf32>
    %cst_34 = arith.constant 1.000000e+00 : f32
    %148 = vector.broadcast %cst_34 : f32 to vector<2x64xf32>
    %149 = arith.addf %148, %147 : vector<2x64xf32>
    %150 = arith.divf %148, %149 : vector<2x64xf32>
    %151 = vector.extract_strided_slice %133 {offsets = [0, 128], sizes = [2, 64], strides = [1, 1]} : vector<2x192xf32> to vector<2x64xf32>
    %152 = vector.extract_strided_slice %134 {offsets = [0, 128], sizes = [2, 64], strides = [1, 1]} : vector<2x192xf32> to vector<2x64xf32>
    %153 = vector.broadcast %7 : vector<1x64xf32> to vector<2x64xf32>
    %154 = arith.addf %152, %153 : vector<2x64xf32>
    %155 = arith.mulf %142, %154 : vector<2x64xf32>
    %156 = arith.addf %151, %155 : vector<2x64xf32>
    %157 = math.tanh %156 : vector<2x64xf32>
    %cst_35 = arith.constant 1.000000e+00 : f32
    %158 = vector.broadcast %cst_35 : f32 to vector<2x64xf32>
    %159 = arith.subf %158, %150 : vector<2x64xf32>
    %160 = arith.mulf %159, %157 : vector<2x64xf32>
    %161 = arith.mulf %150, %131 : vector<2x64xf32>
    %162 = arith.addf %160, %161 : vector<2x64xf32>
    %c8 = arith.constant 8 : index
    %c0_36 = arith.constant 0 : index
    %163 = vector.load %arg11[%c8, %c0_36] : memref<16x64xf32, #tpu.memory_space<vmem>>, vector<2x64xf32>
    tpu.vector_store %arg11[%c8, %c0_36], %162 {strides = array<i32>} : memref<16x64xf32, #tpu.memory_space<vmem>>, vector<2x64xf32>,
    %164 = vector.extract_strided_slice %5 {offsets = [10, 0], sizes = [2, 192], strides = [1, 1]} : vector<16x192xf32> to vector<2x192xf32>
    %cst_37 = arith.constant dense<0.000000e+00> : vector<2x192xf32>
    %165 = tpu.matmul %162, %6, %cst_37 {dimension_numbers = #tpu.dot_dimension_numbers<[1], [0], [0], [1], [0, 0, 1, 1], [], []>} : vector<2x64xf32>, vector<64x192xf32>, vector<2x192xf32> -> vector<2x192xf32>
    %166 = vector.extract_strided_slice %164 {offsets = [0, 0], sizes = [2, 64], strides = [1, 1]} : vector<2x192xf32> to vector<2x64xf32>
    %167 = vector.extract_strided_slice %165 {offsets = [0, 0], sizes = [2, 64], strides = [1, 1]} : vector<2x192xf32> to vector<2x64xf32>
    %168 = arith.addf %166, %167 : vector<2x64xf32>
    %169 = arith.negf %168 : vector<2x64xf32>
    %170 = math.exp %169 : vector<2x64xf32>
    %cst_38 = arith.constant 1.000000e+00 : f32
    %171 = vector.broadcast %cst_38 : f32 to vector<2x64xf32>
    %172 = arith.addf %171, %170 : vector<2x64xf32>
    %173 = arith.divf %171, %172 : vector<2x64xf32>
    %174 = vector.extract_strided_slice %164 {offsets = [0, 64], sizes = [2, 64], strides = [1, 1]} : vector<2x192xf32> to vector<2x64xf32>
    %175 = vector.extract_strided_slice %165 {offsets = [0, 64], sizes = [2, 64], strides = [1, 1]} : vector<2x192xf32> to vector<2x64xf32>
    %176 = arith.addf %174, %175 : vector<2x64xf32>
    %177 = arith.negf %176 : vector<2x64xf32>
    %178 = math.exp %177 : vector<2x64xf32>
    %cst_39 = arith.constant 1.000000e+00 : f32
    %179 = vector.broadcast %cst_39 : f32 to vector<2x64xf32>
    %180 = arith.addf %179, %178 : vector<2x64xf32>
    %181 = arith.divf %179, %180 : vector<2x64xf32>
    %182 = vector.extract_strided_slice %164 {offsets = [0, 128], sizes = [2, 64], strides = [1, 1]} : vector<2x192xf32> to vector<2x64xf32>
    %183 = vector.extract_strided_slice %165 {offsets = [0, 128], sizes = [2, 64], strides = [1, 1]} : vector<2x192xf32> to vector<2x64xf32>
    %184 = vector.broadcast %7 : vector<1x64xf32> to vector<2x64xf32>
    %185 = arith.addf %183, %184 : vector<2x64xf32>
    %186 = arith.mulf %173, %185 : vector<2x64xf32>
    %187 = arith.addf %182, %186 : vector<2x64xf32>
    %188 = math.tanh %187 : vector<2x64xf32>
    %cst_40 = arith.constant 1.000000e+00 : f32
    %189 = vector.broadcast %cst_40 : f32 to vector<2x64xf32>
    %190 = arith.subf %189, %181 : vector<2x64xf32>
    %191 = arith.mulf %190, %188 : vector<2x64xf32>
    %192 = arith.mulf %181, %162 : vector<2x64xf32>
    %193 = arith.addf %191, %192 : vector<2x64xf32>
    %c10 = arith.constant 10 : index
    %c0_41 = arith.constant 0 : index
    %194 = vector.load %arg11[%c10, %c0_41] : memref<16x64xf32, #tpu.memory_space<vmem>>, vector<2x64xf32>
    tpu.vector_store %arg11[%c10, %c0_41], %193 {strides = array<i32>} : memref<16x64xf32, #tpu.memory_space<vmem>>, vector<2x64xf32>,
    %195 = vector.extract_strided_slice %5 {offsets = [12, 0], sizes = [2, 192], strides = [1, 1]} : vector<16x192xf32> to vector<2x192xf32>
    %cst_42 = arith.constant dense<0.000000e+00> : vector<2x192xf32>
    %196 = tpu.matmul %193, %6, %cst_42 {dimension_numbers = #tpu.dot_dimension_numbers<[1], [0], [0], [1], [0, 0, 1, 1], [], []>} : vector<2x64xf32>, vector<64x192xf32>, vector<2x192xf32> -> vector<2x192xf32>
    %197 = vector.extract_strided_slice %195 {offsets = [0, 0], sizes = [2, 64], strides = [1, 1]} : vector<2x192xf32> to vector<2x64xf32>
    %198 = vector.extract_strided_slice %196 {offsets = [0, 0], sizes = [2, 64], strides = [1, 1]} : vector<2x192xf32> to vector<2x64xf32>
    %199 = arith.addf %197, %198 : vector<2x64xf32>
    %200 = arith.negf %199 : vector<2x64xf32>
    %201 = math.exp %200 : vector<2x64xf32>
    %cst_43 = arith.constant 1.000000e+00 : f32
    %202 = vector.broadcast %cst_43 : f32 to vector<2x64xf32>
    %203 = arith.addf %202, %201 : vector<2x64xf32>
    %204 = arith.divf %202, %203 : vector<2x64xf32>
    %205 = vector.extract_strided_slice %195 {offsets = [0, 64], sizes = [2, 64], strides = [1, 1]} : vector<2x192xf32> to vector<2x64xf32>
    %206 = vector.extract_strided_slice %196 {offsets = [0, 64], sizes = [2, 64], strides = [1, 1]} : vector<2x192xf32> to vector<2x64xf32>
    %207 = arith.addf %205, %206 : vector<2x64xf32>
    %208 = arith.negf %207 : vector<2x64xf32>
    %209 = math.exp %208 : vector<2x64xf32>
    %cst_44 = arith.constant 1.000000e+00 : f32
    %210 = vector.broadcast %cst_44 : f32 to vector<2x64xf32>
    %211 = arith.addf %210, %209 : vector<2x64xf32>
    %212 = arith.divf %210, %211 : vector<2x64xf32>
    %213 = vector.extract_strided_slice %195 {offsets = [0, 128], sizes = [2, 64], strides = [1, 1]} : vector<2x192xf32> to vector<2x64xf32>
    %214 = vector.extract_strided_slice %196 {offsets = [0, 128], sizes = [2, 64], strides = [1, 1]} : vector<2x192xf32> to vector<2x64xf32>
    %215 = vector.broadcast %7 : vector<1x64xf32> to vector<2x64xf32>
    %216 = arith.addf %214, %215 : vector<2x64xf32>
    %217 = arith.mulf %204, %216 : vector<2x64xf32>
    %218 = arith.addf %213, %217 : vector<2x64xf32>
    %219 = math.tanh %218 : vector<2x64xf32>
    %cst_45 = arith.constant 1.000000e+00 : f32
    %220 = vector.broadcast %cst_45 : f32 to vector<2x64xf32>
    %221 = arith.subf %220, %212 : vector<2x64xf32>
    %222 = arith.mulf %221, %219 : vector<2x64xf32>
    %223 = arith.mulf %212, %193 : vector<2x64xf32>
    %224 = arith.addf %222, %223 : vector<2x64xf32>
    %c12 = arith.constant 12 : index
    %c0_46 = arith.constant 0 : index
    %225 = vector.load %arg11[%c12, %c0_46] : memref<16x64xf32, #tpu.memory_space<vmem>>, vector<2x64xf32>
    tpu.vector_store %arg11[%c12, %c0_46], %224 {strides = array<i32>} : memref<16x64xf32, #tpu.memory_space<vmem>>, vector<2x64xf32>,
    %226 = vector.extract_strided_slice %5 {offsets = [14, 0], sizes = [2, 192], strides = [1, 1]} : vector<16x192xf32> to vector<2x192xf32>
    %cst_47 = arith.constant dense<0.000000e+00> : vector<2x192xf32>
    %227 = tpu.matmul %224, %6, %cst_47 {dimension_numbers = #tpu.dot_dimension_numbers<[1], [0], [0], [1], [0, 0, 1, 1], [], []>} : vector<2x64xf32>, vector<64x192xf32>, vector<2x192xf32> -> vector<2x192xf32>
    %228 = vector.extract_strided_slice %226 {offsets = [0, 0], sizes = [2, 64], strides = [1, 1]} : vector<2x192xf32> to vector<2x64xf32>
    %229 = vector.extract_strided_slice %227 {offsets = [0, 0], sizes = [2, 64], strides = [1, 1]} : vector<2x192xf32> to vector<2x64xf32>
    %230 = arith.addf %228, %229 : vector<2x64xf32>
    %231 = arith.negf %230 : vector<2x64xf32>
    %232 = math.exp %231 : vector<2x64xf32>
    %cst_48 = arith.constant 1.000000e+00 : f32
    %233 = vector.broadcast %cst_48 : f32 to vector<2x64xf32>
    %234 = arith.addf %233, %232 : vector<2x64xf32>
    %235 = arith.divf %233, %234 : vector<2x64xf32>
    %236 = vector.extract_strided_slice %226 {offsets = [0, 64], sizes = [2, 64], strides = [1, 1]} : vector<2x192xf32> to vector<2x64xf32>
    %237 = vector.extract_strided_slice %227 {offsets = [0, 64], sizes = [2, 64], strides = [1, 1]} : vector<2x192xf32> to vector<2x64xf32>
    %238 = arith.addf %236, %237 : vector<2x64xf32>
    %239 = arith.negf %238 : vector<2x64xf32>
    %240 = math.exp %239 : vector<2x64xf32>
    %cst_49 = arith.constant 1.000000e+00 : f32
    %241 = vector.broadcast %cst_49 : f32 to vector<2x64xf32>
    %242 = arith.addf %241, %240 : vector<2x64xf32>
    %243 = arith.divf %241, %242 : vector<2x64xf32>
    %244 = vector.extract_strided_slice %226 {offsets = [0, 128], sizes = [2, 64], strides = [1, 1]} : vector<2x192xf32> to vector<2x64xf32>
    %245 = vector.extract_strided_slice %227 {offsets = [0, 128], sizes = [2, 64], strides = [1, 1]} : vector<2x192xf32> to vector<2x64xf32>
    %246 = vector.broadcast %7 : vector<1x64xf32> to vector<2x64xf32>
    %247 = arith.addf %245, %246 : vector<2x64xf32>
    %248 = arith.mulf %235, %247 : vector<2x64xf32>
    %249 = arith.addf %244, %248 : vector<2x64xf32>
    %250 = math.tanh %249 : vector<2x64xf32>
    %cst_50 = arith.constant 1.000000e+00 : f32
    %251 = vector.broadcast %cst_50 : f32 to vector<2x64xf32>
    %252 = arith.subf %251, %243 : vector<2x64xf32>
    %253 = arith.mulf %252, %250 : vector<2x64xf32>
    %254 = arith.mulf %243, %224 : vector<2x64xf32>
    %255 = arith.addf %253, %254 : vector<2x64xf32>
    %c14 = arith.constant 14 : index
    %c0_51 = arith.constant 0 : index
    %256 = vector.load %arg11[%c14, %c0_51] : memref<16x64xf32, #tpu.memory_space<vmem>>, vector<2x64xf32>
    tpu.vector_store %arg11[%c14, %c0_51], %255 {strides = array<i32>} : memref<16x64xf32, #tpu.memory_space<vmem>>, vector<2x64xf32>,
    %c0_52 = arith.constant 0 : index
    %c0_53 = arith.constant 0 : index
    %257 = vector.load %arg11[%c0_52, %c0_53] : memref<16x64xf32, #tpu.memory_space<vmem>>, vector<16x64xf32>
    %c0_54 = arith.constant 0 : index
    %c0_55 = arith.constant 0 : index
    %258 = vector.load %arg7[%c0_54, %c0_55] : memref<64x128xf32, #tpu.memory_space<vmem>>, vector<64x128xf32>
    %cst_56 = arith.constant dense<0.000000e+00> : vector<16x128xf32>
    %259 = tpu.matmul %257, %258, %cst_56 {dimension_numbers = #tpu.dot_dimension_numbers<[1], [0], [0], [1], [0, 0, 1, 1], [], []>} : vector<16x64xf32>, vector<64x128xf32>, vector<16x128xf32> -> vector<16x128xf32>
    %c0_57 = arith.constant 0 : index
    %c0_58 = arith.constant 0 : index
    %260 = vector.load %arg8[%c0_57, %c0_58] : memref<1x128xf32, #tpu.memory_space<vmem>>, vector<1x128xf32>
    %261 = vector.broadcast %260 : vector<1x128xf32> to vector<16x128xf32>
    %262 = arith.addf %259, %261 : vector<16x128xf32>
    %c0_59 = arith.constant 0 : index
    %c0_60 = arith.constant 0 : index
    %263 = vector.load %arg9[%c0_59, %c0_60] : memref<16x128xf32, #tpu.memory_space<vmem>>, vector<16x128xf32>
    tpu.vector_store %arg9[%c0_59, %c0_60], %262 {strides = array<i32>} : memref<16x128xf32, #tpu.memory_space<vmem>>, vector<16x128xf32>,
    %c0_61 = arith.constant 0 : index
    %c0_62 = arith.constant 0 : index
    %264 = vector.load %arg10[%c0_61, %c0_62] : memref<2x64xf32, #tpu.memory_space<vmem>>, vector<2x64xf32>
    tpu.vector_store %arg10[%c0_61, %c0_62], %255 {strides = array<i32>} : memref<2x64xf32, #tpu.memory_space<vmem>>, vector<2x64xf32>,
    return
  }
  func.func @transform_0(%arg0: i32) -> (i32, i32) {
    %c0_i32 = arith.constant 0 : i32
    %c0_i32_0 = arith.constant 0 : i32
    %c0_i32_1 = arith.constant 0 : i32
    return %c0_i32, %c0_i32_0 : i32, i32
  }
  func.func @transform_1(%arg0: i32) -> (i32, i32) {
    %c0_i32 = arith.constant 0 : i32
    %c0_i32_0 = arith.constant 0 : i32
    %c0_i32_1 = arith.constant 0 : i32
    return %c0_i32, %c0_i32_0 : i32, i32
  }
  func.func @transform_2(%arg0: i32) -> (i32, i32) {
    %c0_i32 = arith.constant 0 : i32
    %c0_i32_0 = arith.constant 0 : i32
    %c0_i32_1 = arith.constant 0 : i32
    return %c0_i32, %c0_i32_0 : i32, i32
  }
  func.func @transform_3(%arg0: i32) -> (i32, i32) {
    %c0_i32 = arith.constant 0 : i32
    %c0_i32_0 = arith.constant 0 : i32
    %c0_i32_1 = arith.constant 0 : i32
    return %c0_i32, %c0_i32_0 : i32, i32
  }
  func.func @transform_4(%arg0: i32) -> (i32, i32) {
    %c0_i32 = arith.constant 0 : i32
    %c0_i32_0 = arith.constant 0 : i32
    %c0_i32_1 = arith.constant 0 : i32
    return %c0_i32, %c0_i32_0 : i32, i32
  }
  func.func @transform_5(%arg0: i32) -> (i32, i32) {
    %c0_i32 = arith.constant 0 : i32
    %c0_i32_0 = arith.constant 0 : i32
    %c0_i32_1 = arith.constant 0 : i32
    return %c0_i32, %c0_i32_0 : i32, i32
  }
  func.func @transform_6(%arg0: i32) -> (i32, i32) {
    %c0_i32 = arith.constant 0 : i32
    %c0_i32_0 = arith.constant 0 : i32
    %c0_i32_1 = arith.constant 0 : i32
    return %c0_i32, %c0_i32_0 : i32, i32
  }
  func.func @transform_7(%arg0: i32) -> (i32, i32) {
    %c0_i32 = arith.constant 0 : i32
    %c0_i32_0 = arith.constant 0 : i32
    %c0_i32_1 = arith.constant 0 : i32
    return %c0_i32, %c0_i32_0 : i32, i32
  }
  func.func @transform_8(%arg0: i32) -> (i32, i32) {
    %c0_i32 = arith.constant 0 : i32
    %c0_i32_0 = arith.constant 0 : i32
    %c0_i32_1 = arith.constant 0 : i32
    return %c0_i32, %c0_i32_0 : i32, i32
  }
  func.func @transform_9(%arg0: i32) -> (i32, i32) {
    %c0_i32 = arith.constant 0 : i32
    %c0_i32_0 = arith.constant 0 : i32
    %c0_i32_1 = arith.constant 0 : i32
    return %c0_i32, %c0_i32_0 : i32, i32
  }
}

</mosaic_0001>

<llo_original>
// kernel: tpu_custom_call.1
$region0: #{tpu_custom_call.1}
  #allocation0 [shape = 'u32[]', space=smem, size = 0x4, offset = 0x4, fixed_abs, tag = 'smem constant byte address 0x4 - core index']
  #allocation1 [shape = 'u32[144,128]{1,0:T(1,128)}', space=vmem, size = 0x12000, scoped, tag = 'internal scratch']
  #allocation2 [shape = 'f32[16,64]{1,0:T(8,128)}', space=vmem, size = 0x2000, scoped, tag = 'scratch operand']
  %s0 = inlined_call_operand.vmem [shape: f32[16,100], index: 0, kind: input, shape index: {}]
  %s1 = inlined_call_operand.vmem [shape: f32[2,64], index: 1, kind: input, shape index: {}]
  %s2 = inlined_call_operand.vmem [shape: f32[100,192], index: 2, kind: input, shape index: {}]
  %s3 = inlined_call_operand.vmem [shape: f32[64,192], index: 3, kind: input, shape index: {}]
  %s4 = inlined_call_operand.vmem [shape: f32[1,192], index: 4, kind: input, shape index: {}]
  %s5 = inlined_call_operand.vmem [shape: f32[1,64], index: 5, kind: input, shape index: {}]
  %s6 = inlined_call_operand.vmem [shape: f32[64,128], index: 6, kind: input, shape index: {}]
  %s7 = inlined_call_operand.vmem [shape: f32[1,128], index: 7, kind: input, shape index: {}]
  %s8 = inlined_call_operand.hbm [shape: f32[16,128], index: 8, kind: output, shape index: {0}]
  %s9 = inlined_call_operand.hbm [shape: f32[2,64], index: 9, kind: output, shape index: {1}]
  %10 = xla_tuple %s8, %s9
  %s11 = sld [smem:[#allocation0]]
  $region50: #{tpu_custom_call.1} parent=0
    _
  %s13 = ssub.s32 1, %s11
  %s14 = scalar_select 0, %s13, %s11
  $region1: #{tpu_custom_call.1} parent=0
    #allocation3 [shape = 'u8[8192]{0}', space=vmem, size = 0x2000, scoped, tag = 'output window, operand 0, single buffered']
    #allocation4 [shape = 's32[1]{0}', space=sflag, size = 0x4, scoped, tag = 'scoped memory for tpu_custom_call.1']
    #allocation5 [shape = 'u8[1024]{0}', space=vmem, size = 0x400, scoped, tag = 'output window, operand 1, single buffered']
    #allocation6 [shape = 's32[1]{0}', space=sflag, size = 0x4, scoped, tag = 'scoped memory for tpu_custom_call.1']
    %15 = vsyncpa [#allocation4], 0
    %16 = vsyncpa [#allocation6], 0
    // Predicated region
    $region2: #{tpu_custom_call.1} parent=1 // pred_check
      _
    $region3: #{tpu_custom_call.1} parent=1 // pred_check_branch
      %18 = sbr.rel (0) target = $region5
    $region4: #{tpu_custom_call.1} parent=1 // pred_region
      _
    $region5: #{tpu_custom_call.1} parent=1 // pred_fallthru
      _
    // Predicated region
    $region6: #{tpu_custom_call.1} parent=1 // pred_check
      _
    $region7: #{tpu_custom_call.1} parent=1 // pred_check_branch
      %20 = sbr.rel (0) target = $region9
    $region8: #{tpu_custom_call.1} parent=1 // pred_region
      _
    $region9: #{tpu_custom_call.1} parent=1 // pred_fallthru
      _
    // Predicated region
    $region10: #{tpu_custom_call.1} parent=1 // pred_check
      _
    $region11: #{tpu_custom_call.1} parent=1 // pred_check_branch
      %22 = sbr.rel (0) target = $region13
    $region12: #{tpu_custom_call.1} parent=1 // pred_region
      _
    $region13: #{tpu_custom_call.1} parent=1 // pred_fallthru
      _
    // Predicated region
    $region14: #{tpu_custom_call.1} parent=1 // pred_check
      _
    $region15: #{tpu_custom_call.1} parent=1 // pred_check_branch
      %24 = sbr.rel (0) target = $region17
    $region16: #{tpu_custom_call.1} parent=1 // pred_region
      _
    $region17: #{tpu_custom_call.1} parent=1 // pred_fallthru
      _
    // Predicated region
    $region18: #{tpu_custom_call.1} parent=1 // pred_check
      _
    $region19: #{tpu_custom_call.1} parent=1 // pred_check_branch
      %26 = sbr.rel (0) target = $region21
    $region20: #{tpu_custom_call.1} parent=1 // pred_region
      _
    $region21: #{tpu_custom_call.1} parent=1 // pred_fallthru
      _
    // Predicated region
    $region22: #{tpu_custom_call.1} parent=1 // pred_check
      _
    $region23: #{tpu_custom_call.1} parent=1 // pred_check_branch
      %28 = sbr.rel (0) target = $region25
    $region24: #{tpu_custom_call.1} parent=1 // pred_region
      _
    $region25: #{tpu_custom_call.1} parent=1 // pred_fallthru
      _
    // Predicated region
    $region26: #{tpu_custom_call.1} parent=1 // pred_check
      _
    $region27: #{tpu_custom_call.1} parent=1 // pred_check_branch
      %30 = sbr.rel (0) target = $region29
    $region28: #{tpu_custom_call.1} parent=1 // pred_region
      _
    $region29: #{tpu_custom_call.1} parent=1 // pred_fallthru
      _
    // Predicated region
    $region30: #{tpu_custom_call.1} parent=1 // pred_check
      _
    $region31: #{tpu_custom_call.1} parent=1 // pred_check_branch
      %32 = sbr.rel (0) target = $region33
    $region32: #{tpu_custom_call.1} parent=1 // pred_region
      _
    $region33: #{tpu_custom_call.1} parent=1 // pred_fallthru
      _
    %v33 = vld [vmem:[%s0] sm:$0xff]
    %v34 = vld [vmem:[%s0 + $0x8] sm:$0xff]
    %v35 = vld [vmem:[%s2] sm:$0xff]
    %v36 = vld [vmem:[%s2 + $0x8] sm:$0xff]
    %v37 = vld [vmem:[%s2 + $0x10] sm:$0xff]
    %v38 = vld [vmem:[%s2 + $0x18] sm:$0xff]
    %v39 = vld [vmem:[%s2 + $0x20] sm:$0xff]
    %v40 = vld [vmem:[%s2 + $0x28] sm:$0xff]
    %v41 = vld [vmem:[%s2 + $0x30] sm:$0xff]
    %v42 = vld [vmem:[%s2 + $0x38] sm:$0xff]
    %v43 = vld [vmem:[%s2 + $0x40] sm:$0xff]
    %v44 = vld [vmem:[%s2 + $0x48] sm:$0xff]
    %v45 = vld [vmem:[%s2 + $0x50] sm:$0xff]
    %v46 = vld [vmem:[%s2 + $0x58] sm:$0xff]
    %v47 = vld [vmem:[%s2 + $0x60] sm:$0xff]
    %v48 = vld [vmem:[%s2 + $0x68] sm:$0xff]
    %v49 = vld [vmem:[%s2 + $0x70] sm:$0xff]
    %v50 = vld [vmem:[%s2 + $0x78] sm:$0xff]
    %v51 = vld [vmem:[%s2 + $0x80] sm:$0xff]
    %v52 = vld [vmem:[%s2 + $0x88] sm:$0xff]
    %v53 = vld [vmem:[%s2 + $0x90] sm:$0xff]
    %v54 = vld [vmem:[%s2 + $0x98] sm:$0xff]
    %v55 = vld [vmem:[%s2 + $0xa0] sm:$0xff]
    %v56 = vld [vmem:[%s2 + $0xa8] sm:$0xff]
    %v57 = vld [vmem:[%s2 + $0xb0] sm:$0xff]
    %v58 = vld [vmem:[%s2 + $0xb8] sm:$0xff]
    %v59 = vld [vmem:[%s2 + $0xc0] sm:$0xf]
    %v60 = vld [vmem:[%s2 + $0xc8] sm:$0xf]
    %v61 = vld [vmem:[%s4] sm:$0x3]
    %v63 = vlaneseq
    %v64 = vshrl.u32 %v63, 7
    %v65 = vsub.s32 0, %v64
    %v66 = vrot.slane %v61, %v65
    %v67 = vlaneseq
    %v68 = vshrl.u32 %v67, 7
    %v69 = vsub.s32 1, %v68
    %v70 = vrot.slane %v61, %v69
    %vm73 = vcmask 818176
    %v75 = vsel %vm73, %v33, 0
    %v78 = vsel %vm73, %v34, 0
    %vm80 = vcmask 1043456
    %v82 = vsel %vm80, %v59, 0
    %v85 = vsel %vm80, %v60, 0
    %87 = vmatprep.subr.mxu0 %v36
    %88 = vmatpush1.msra.mxu0 %v35
    %89 = vmatprep.subr.mxu0 %v38
    %90 = vmatpush1.msra.mxu0 %v37
    %91 = vmatprep.subr.mxu0 %v40
    %92 = vmatpush1.msra.mxu0 %v39
    %93 = vmatprep.subr.mxu0 %v42
    %94 = vmatpush1.msra.mxu0 %v41
    %95 = vmatprep.subr.mxu0 %v44
    %96 = vmatpush1.msra.mxu0 %v43
    %97 = vmatprep.subr.mxu0 %v46
    %98 = vmatpush1.msra.mxu0 %v45
    %99 = vmatprep.subr.mxu0 %v48
    %100 = vmatpush1.msra.mxu0 %v47
    %101 = vmatprep.subr.mxu0 %v50
    %102 = vmatpush1.msra.mxu0 %v49
    %103 = vmatprep.subr.mxu0 %v52
    %104 = vmatpush1.msra.mxu0 %v51
    %105 = vmatprep.subr.mxu0 %v54
    %106 = vmatpush1.msra.mxu0 %v53
    %107 = vmatprep.subr.mxu0 %v56
    %108 = vmatpush1.msra.mxu0 %v55
    %109 = vmatprep.subr.mxu0 %v58
    %110 = vmatpush1.msra.mxu0 %v57
    %111 = vmatprep.subr.mxu0 %v85
    %112 = vmatpush1.msra.mxu0 %v82
    %113 = vmatprep.subr.mxu0 0.0
    %114 = vmatpush1.msra.mxu0 0.0
    %115 = vmatprep.subr.mxu0 0.0
    %116 = vmatpush1.msra.mxu0 0.0
    %117 = vmatprep.subr.mxu0 0.0
    %118 = vmatpush1.msra.mxu0 0.0
    %119 = vmatprep.subr.mxu0 0.0
    %120 = vmatpush1.msra.mxu0 0.0
    %121 = vmatprep.subr.mxu0 0.0
    %122 = vmatpush1.msra.mxu0 0.0
    %123 = vmatprep.subr.mxu0 0.0
    %124 = vmatpush1.msra.mxu0 0.0
    %125 = vmatprep.subr.mxu0 0.0
    %126 = vmatpush1.msra.mxu0 0.0
    %127 = vmatprep.subr.mxu0 0.0
    %128 = vmatpush1.msra.mxu0 0.0
    %129 = vmatprep.subr.mxu0 0.0
    %130 = vmatpush1.msra.mxu0 0.0
    %131 = vmatprep.subr.mxu0 0.0
    %132 = vmatpush1.msra.mxu0 0.0
    %133 = vmatprep.subr.mxu0 0.0
    %134 = vmatpush1.msra.mxu0 0.0
    %135 = vmatprep.subr.mxu0 0.0
    %136 = vmatpush1.msra.mxu0 0.0
    %137 = vmatprep.subr.mxu0 0.0
    %138 = vmatpush1.msra.mxu0 0.0
    %139 = vmatprep.subr.mxu0 0.0
    %140 = vmatpush1.msra.mxu0 0.0
    %141 = vmatprep.subr.mxu0 0.0
    %142 = vmatpush1.msra.mxu0 0.0
    %143 = vmatprep.subr.mxu0 0.0
    %144 = vmatpush1.msra.mxu0 0.0
    %145 = vmatprep.subr.mxu0 0.0
    %146 = vmatpush1.msra.mxu0 0.0
    %147 = vmatprep.subr.mxu0 0.0
    %148 = vmatpush1.msra.mxu0 0.0
    %149 = vmatprep.subr.mxu0 0.0
    %150 = vmatpush1.msra.mxu0 0.0
    %151 = vmatprep.mubr.f32.mxu0 0.0
    %152 = vmatmul.mubr.f32.gmra.mrb[0].mxu0 %v75
    %v153 = vpop.f32.mrb[0].mxu0
    %v154 = vadd.f32 %v66, %v153
    %v155 = vpop.f32.mrb[0].mxu0
    %v156 = vadd.f32 %v70, %v155
    %157 = vmatprep.mubr.f32.mxu0 0.0
    %158 = vmatmul.mubr.f32.gmra.mrb[0].mxu0 %v78
    %v159 = vpop.f32.mrb[0].mxu0
    %v160 = vadd.f32 %v66, %v159
    %v161 = vpop.f32.mrb[0].mxu0
    %v162 = vadd.f32 %v70, %v161
    %163 = vdwg.mxu0
    %v164 = vld [vmem:[%s3] sm:$0xff]
    %v165 = vld [vmem:[%s3 + $0x8] sm:$0xff]
    %v166 = vld [vmem:[%s3 + $0x10] sm:$0xff]
    %v167 = vld [vmem:[%s3 + $0x18] sm:$0xff]
    %v168 = vld [vmem:[%s3 + $0x20] sm:$0xff]
    %v169 = vld [vmem:[%s3 + $0x28] sm:$0xff]
    %v170 = vld [vmem:[%s3 + $0x30] sm:$0xff]
    %v171 = vld [vmem:[%s3 + $0x38] sm:$0xff]
    %v172 = vld [vmem:[%s3 + $0x40] sm:$0xff]
    %v173 = vld [vmem:[%s3 + $0x48] sm:$0xff]
    %v174 = vld [vmem:[%s3 + $0x50] sm:$0xff]
    %v175 = vld [vmem:[%s3 + $0x58] sm:$0xff]
    %v176 = vld [vmem:[%s3 + $0x60] sm:$0xff]
    %v177 = vld [vmem:[%s3 + $0x68] sm:$0xff]
    %v178 = vld [vmem:[%s3 + $0x70] sm:$0xff]
    %v179 = vld [vmem:[%s3 + $0x78] sm:$0xff]
    %v180 = vld [vmem:[%s5] sm:$0x1]
    %v181 = vld [vmem:[%s1] sm:$0x3]
    %vm182 = vcmask 523264
    %v184 = vsel %vm182, %v181, 0
    %186 = vmatprep.subr.mxu0 %v165
    %187 = vmatpush1.msra.mxu0 %v164
    %188 = vmatprep.subr.mxu0 %v167
    %189 = vmatpush1.msra.mxu0 %v166
    %190 = vmatprep.subr.mxu0 %v169
    %191 = vmatpush1.msra.mxu0 %v168
    %192 = vmatprep.subr.mxu0 %v171
    %193 = vmatpush1.msra.mxu0 %v170
    %194 = vmatprep.subr.mxu0 %v173
    %195 = vmatpush1.msra.mxu0 %v172
    %196 = vmatprep.subr.mxu0 %v175
    %197 = vmatpush1.msra.mxu0 %v174
    %198 = vmatprep.subr.mxu0 %v177
    %199 = vmatpush1.msra.mxu0 %v176
    %200 = vmatprep.subr.mxu0 %v179
    %201 = vmatpush1.msra.mxu0 %v178
    %202 = vmatprep.subr.mxu0 0.0
    %203 = vmatpush1.msra.mxu0 0.0
    %204 = vmatprep.subr.mxu0 0.0
    %205 = vmatpush1.msra.mxu0 0.0
    %206 = vmatprep.subr.mxu0 0.0
    %207 = vmatpush1.msra.mxu0 0.0
    %208 = vmatprep.subr.mxu0 0.0
    %209 = vmatpush1.msra.mxu0 0.0
    %210 = vmatprep.subr.mxu0 0.0
    %211 = vmatpush1.msra.mxu0 0.0
    %212 = vmatprep.subr.mxu0 0.0
    %213 = vmatpush1.msra.mxu0 0.0
    %214 = vmatprep.subr.mxu0 0.0
    %215 = vmatpush1.msra.mxu0 0.0
    %216 = vmatprep.subr.mxu0 0.0
    %217 = vmatpush1.msra.mxu0 0.0
    %218 = vmatprep.subr.mxu0 0.0
    %219 = vmatpush1.msra.mxu0 0.0
    %220 = vmatprep.subr.mxu0 0.0
    %221 = vmatpush1.msra.mxu0 0.0
    %222 = vmatprep.subr.mxu0 0.0
    %223 = vmatpush1.msra.mxu0 0.0
    %224 = vmatprep.subr.mxu0 0.0
    %225 = vmatpush1.msra.mxu0 0.0
    %226 = vmatprep.subr.mxu0 0.0
    %227 = vmatpush1.msra.mxu0 0.0
    %228 = vmatprep.subr.mxu0 0.0
    %229 = vmatpush1.msra.mxu0 0.0
    %230 = vmatprep.subr.mxu0 0.0
    %231 = vmatpush1.msra.mxu0 0.0
    %232 = vmatprep.subr.mxu0 0.0
    %233 = vmatpush1.msra.mxu0 0.0
    %234 = vmatprep.subr.mxu0 0.0
    %235 = vmatpush1.msra.mxu0 0.0
    %236 = vmatprep.subr.mxu0 0.0
    %237 = vmatpush1.msra.mxu0 0.0
    %238 = vmatprep.subr.mxu0 0.0
    %239 = vmatpush1.msra.mxu0 0.0
    %240 = vmatprep.subr.mxu0 0.0
    %241 = vmatpush1.msra.mxu0 0.0
    %242 = vmatprep.subr.mxu0 0.0
    %243 = vmatpush1.msra.mxu0 0.0
    %244 = vmatprep.subr.mxu0 0.0
    %245 = vmatpush1.msra.mxu0 0.0
    %246 = vmatprep.subr.mxu0 0.0
    %247 = vmatpush1.msra.mxu0 0.0
    %248 = vmatprep.subr.mxu0 0.0
    %249 = vmatpush1.msra.mxu0 0.0
    %250 = vmatprep.mubr.f32.mxu0 0.0
    %251 = vmatmul.mubr.f32.gmra.mrb[0].mxu0 %v184
    %v252 = vpop.f32.mrb[0].mxu0
    %v253 = vadd.f32 0.0, %v252
    %v254 = vpop.f32.mrb[0].mxu0
    %v255 = vadd.f32 0.0, %v254
    %256 = vdwg.mxu0
    %v257 = vadd.f32 %v154, %v253
    %v258 = vxor.u32 %v257, 2147483648
    %v259 = vmul.f32 %v258, 1.442695
    %v260 = vpow.pop %v259
    %v261 = vadd.f32 %v260, 1.0
    %v262 = vrcp.pop %v261
    %v263 = vmul.f32 1.0, %v262
    %v265 = vlaneseq
    %v266 = vshrl.u32 %v265, 7
    %v267 = vsub.s32 0, %v266
    %v268 = vrot.slane %v180, %v267
    %v270 = vadd.f32 %v255, %v268
    %v271 = vmul.f32 %v263, %v270
    %v272 = vadd.f32 %v156, %v271
    %v273 = vtanh.pop %v272
    %v274 = vsub.f32 1.0, %v263
    %276 = vrot.lane.b32.xlu0 %v273, 64
    %v277 = vpop.permute.xlu0 %276
    %v279 = vmul.f32 %v274, %v277
    %280 = vrot.lane.b32.xlu0 %v181, 64
    %v281 = vpop.permute.xlu0 %280
    %v283 = vmul.f32 %v263, %v281
    %v284 = vadd.f32 %v279, %v283
    %286 = vrot.lane.b32.xlu0 %v284, 64
    %v287 = vpop.permute.xlu0 %286
    %vm289 = vcmask 517120
    %290 = vst.msk [vmem:[#allocation2] sm:$0x3] %vm289, %v287
    %v291 = vsel %vm182, %v287, 0
    %293 = vmatprep.subr.mxu0 %v165
    %294 = vmatpush1.msra.mxu0 %v164
    %295 = vmatprep.subr.mxu0 %v167
    %296 = vmatpush1.msra.mxu0 %v166
    %297 = vmatprep.subr.mxu0 %v169
    %298 = vmatpush1.msra.mxu0 %v168
    %299 = vmatprep.subr.mxu0 %v171
    %300 = vmatpush1.msra.mxu0 %v170
    %301 = vmatprep.subr.mxu0 %v173
    %302 = vmatpush1.msra.mxu0 %v172
    %303 = vmatprep.subr.mxu0 %v175
    %304 = vmatpush1.msra.mxu0 %v174
    %305 = vmatprep.subr.mxu0 %v177
    %306 = vmatpush1.msra.mxu0 %v176
    %307 = vmatprep.subr.mxu0 %v179
    %308 = vmatpush1.msra.mxu0 %v178
    %309 = vmatprep.subr.mxu0 0.0
    %310 = vmatpush1.msra.mxu0 0.0
    %311 = vmatprep.subr.mxu0 0.0
    %312 = vmatpush1.msra.mxu0 0.0
    %313 = vmatprep.subr.mxu0 0.0
    %314 = vmatpush1.msra.mxu0 0.0
    %315 = vmatprep.subr.mxu0 0.0
    %316 = vmatpush1.msra.mxu0 0.0
    %317 = vmatprep.subr.mxu0 0.0
    %318 = vmatpush1.msra.mxu0 0.0
    %319 = vmatprep.subr.mxu0 0.0
    %320 = vmatpush1.msra.mxu0 0.0
    %321 = vmatprep.subr.mxu0 0.0
    %322 = vmatpush1.msra.mxu0 0.0
    %323 = vmatprep.subr.mxu0 0.0
    %324 = vmatpush1.msra.mxu0 0.0
    %325 = vmatprep.subr.mxu0 0.0
    %326 = vmatpush1.msra.mxu0 0.0
    %327 = vmatprep.subr.mxu0 0.0
    %328 = vmatpush1.msra.mxu0 0.0
    %329 = vmatprep.subr.mxu0 0.0
    %330 = vmatpush1.msra.mxu0 0.0
    %331 = vmatprep.subr.mxu0 0.0
    %332 = vmatpush1.msra.mxu0 0.0
    %333 = vmatprep.subr.mxu0 0.0
    %334 = vmatpush1.msra.mxu0 0.0
    %335 = vmatprep.subr.mxu0 0.0
    %336 = vmatpush1.msra.mxu0 0.0
    %337 = vmatprep.subr.mxu0 0.0
    %338 = vmatpush1.msra.mxu0 0.0
    %339 = vmatprep.subr.mxu0 0.0
    %340 = vmatpush1.msra.mxu0 0.0
    %341 = vmatprep.subr.mxu0 0.0
    %342 = vmatpush1.msra.mxu0 0.0
    %343 = vmatprep.subr.mxu0 0.0
    %344 = vmatpush1.msra.mxu0 0.0
    %345 = vmatprep.subr.mxu0 0.0
    %346 = vmatpush1.msra.mxu0 0.0
    %347 = vmatprep.subr.mxu0 0.0
    %348 = vmatpush1.msra.mxu0 0.0
    %349 = vmatprep.subr.mxu0 0.0
    %350 = vmatpush1.msra.mxu0 0.0
    %351 = vmatprep.subr.mxu0 0.0
    %352 = vmatpush1.msra.mxu0 0.0
    %353 = vmatprep.subr.mxu0 0.0
    %354 = vmatpush1.msra.mxu0 0.0
    %355 = vmatprep.subr.mxu0 0.0
    %356 = vmatpush1.msra.mxu0 0.0
    %357 = vmatprep.mubr.f32.mxu0 0.0
    %358 = vmatmul.mubr.f32.gmra.mrb[0].mxu0 %v291
    %v359 = vpop.f32.mrb[0].mxu0
    %v360 = vadd.f32 0.0, %v359
    %v361 = vpop.f32.mrb[0].mxu0
    %v362 = vadd.f32 0.0, %v361
    %363 = vdwg.mxu0
    %v365 = vrot.slane %v360, 6
    %v367 = vadd.f32 %v154, %v365
    %v368 = vxor.u32 %v367, 2147483648
    %v369 = vmul.f32 %v368, 1.442695
    %v370 = vpow.pop %v369
    %v371 = vadd.f32 %v370, 1.0
    %v372 = vrcp.pop %v371
    %v373 = vmul.f32 1.0, %v372
    %v374 = vadd.f32 %v362, %v268
    %v376 = vrot.slane %v374, 6
    %v378 = vmul.f32 %v373, %v376
    %v379 = vadd.f32 %v156, %v378
    %v380 = vtanh.pop %v379
    %v381 = vsub.f32 1.0, %v373
    %383 = vrot.lane.b32.xlu0 %v380, 64
    %v384 = vpop.permute.xlu0 %383
    %v386 = vmul.f32 %v381, %v384
    %v387 = vrot.slane %v284, 6
    %v389 = vmul.f32 %v373, %v387
    %v390 = vadd.f32 %v386, %v389
    %392 = vrot.lane.b32.xlu0 %v390, 64
    %v393 = vpop.permute.xlu0 %392
    %vm395 = vcmask 519170
    %396 = vst.msk [vmem:[#allocation2] sm:$0xc] %vm395, %v393
    %v397 = vrot.slane %v390, 2
    %398 = vrot.lane.b32.xlu0 %v397, 64
    %v399 = vpop.permute.xlu0 %398
    %v400 = vsel %vm182, %v399, 0
    %402 = vmatprep.subr.mxu0 %v165
    %403 = vmatpush1.msra.mxu0 %v164
    %404 = vmatprep.subr.mxu0 %v167
    %405 = vmatpush1.msra.mxu0 %v166
    %406 = vmatprep.subr.mxu0 %v169
    %407 = vmatpush1.msra.mxu0 %v168
    %408 = vmatprep.subr.mxu0 %v171
    %409 = vmatpush1.msra.mxu0 %v170
    %410 = vmatprep.subr.mxu0 %v173
    %411 = vmatpush1.msra.mxu0 %v172
    %412 = vmatprep.subr.mxu0 %v175
    %413 = vmatpush1.msra.mxu0 %v174
    %414 = vmatprep.subr.mxu0 %v177
    %415 = vmatpush1.msra.mxu0 %v176
    %416 = vmatprep.subr.mxu0 %v179
    %417 = vmatpush1.msra.mxu0 %v178
    %418 = vmatprep.subr.mxu0 0.0
    %419 = vmatpush1.msra.mxu0 0.0
    %420 = vmatprep.subr.mxu0 0.0
    %421 = vmatpush1.msra.mxu0 0.0
    %422 = vmatprep.subr.mxu0 0.0
    %423 = vmatpush1.msra.mxu0 0.0
    %424 = vmatprep.subr.mxu0 0.0
    %425 = vmatpush1.msra.mxu0 0.0
    %426 = vmatprep.subr.mxu0 0.0
    %427 = vmatpush1.msra.mxu0 0.0
    %428 = vmatprep.subr.mxu0 0.0
    %429 = vmatpush1.msra.mxu0 0.0
    %430 = vmatprep.subr.mxu0 0.0
    %431 = vmatpush1.msra.mxu0 0.0
    %432 = vmatprep.subr.mxu0 0.0
    %433 = vmatpush1.msra.mxu0 0.0
    %434 = vmatprep.subr.mxu0 0.0
    %435 = vmatpush1.msra.mxu0 0.0
    %436 = vmatprep.subr.mxu0 0.0
    %437 = vmatpush1.msra.mxu0 0.0
    %438 = vmatprep.subr.mxu0 0.0
    %439 = vmatpush1.msra.mxu0 0.0
    %440 = vmatprep.subr.mxu0 0.0
    %441 = vmatpush1.msra.mxu0 0.0
    %442 = vmatprep.subr.mxu0 0.0
    %443 = vmatpush1.msra.mxu0 0.0
    %444 = vmatprep.subr.mxu0 0.0
    %445 = vmatpush1.msra.mxu0 0.0
    %446 = vmatprep.subr.mxu0 0.0
    %447 = vmatpush1.msra.mxu0 0.0
    %448 = vmatprep.subr.mxu0 0.0
    %449 = vmatpush1.msra.mxu0 0.0
    %450 = vmatprep.subr.mxu0 0.0
    %451 = vmatpush1.msra.mxu0 0.0
    %452 = vmatprep.subr.mxu0 0.0
    %453 = vmatpush1.msra.mxu0 0.0
    %454 = vmatprep.subr.mxu0 0.0
    %455 = vmatpush1.msra.mxu0 0.0
    %456 = vmatprep.subr.mxu0 0.0
    %457 = vmatpush1.msra.mxu0 0.0
    %458 = vmatprep.subr.mxu0 0.0
    %459 = vmatpush1.msra.mxu0 0.0
    %460 = vmatprep.subr.mxu0 0.0
    %461 = vmatpush1.msra.mxu0 0.0
    %462 = vmatprep.subr.mxu0 0.0
    %463 = vmatpush1.msra.mxu0 0.0
    %464 = vmatprep.subr.mxu0 0.0
    %465 = vmatpush1.msra.mxu0 0.0
    %466 = vmatprep.mubr.f32.mxu0 0.0
    %467 = vmatmul.mubr.f32.gmra.mrb[0].mxu0 %v400
    %v468 = vpop.f32.mrb[0].mxu0
    %v469 = vadd.f32 0.0, %v468
    %v470 = vpop.f32.mrb[0].mxu0
    %v471 = vadd.f32 0.0, %v470
    %472 = vdwg.mxu0
    %v474 = vrot.slane %v469, 4
    %v476 = vadd.f32 %v154, %v474
    %v477 = vxor.u32 %v476, 2147483648
    %v478 = vmul.f32 %v477, 1.442695
    %v479 = vpow.pop %v478
    %v480 = vadd.f32 %v479, 1.0
    %v481 = vrcp.pop %v480
    %v482 = vmul.f32 1.0, %v481
    %v483 = vadd.f32 %v471, %v268
    %v485 = vrot.slane %v483, 4
    %v487 = vmul.f32 %v482, %v485
    %v488 = vadd.f32 %v156, %v487
    %v489 = vtanh.pop %v488
    %v490 = vsub.f32 1.0, %v482
    %492 = vrot.lane.b32.xlu0 %v489, 64
    %v493 = vpop.permute.xlu0 %492
    %v495 = vmul.f32 %v490, %v493
    %v496 = vrot.slane %v390, 6
    %v498 = vmul.f32 %v482, %v496
    %v499 = vadd.f32 %v495, %v498
    %501 = vrot.lane.b32.xlu0 %v499, 64
    %v502 = vpop.permute.xlu0 %501
    %vm504 = vcmask 521220
    %505 = vst.msk [vmem:[#allocation2] sm:$0x30] %vm504, %v502
    %v506 = vrot.slane %v499, 4
    %507 = vrot.lane.b32.xlu0 %v506, 64
    %v508 = vpop.permute.xlu0 %507
    %v509 = vsel %vm182, %v508, 0
    %511 = vmatprep.subr.mxu0 %v165
    %512 = vmatpush1.msra.mxu0 %v164
    %513 = vmatprep.subr.mxu0 %v167
    %514 = vmatpush1.msra.mxu0 %v166
    %515 = vmatprep.subr.mxu0 %v169
    %516 = vmatpush1.msra.mxu0 %v168
    %517 = vmatprep.subr.mxu0 %v171
    %518 = vmatpush1.msra.mxu0 %v170
    %519 = vmatprep.subr.mxu0 %v173
    %520 = vmatpush1.msra.mxu0 %v172
    %521 = vmatprep.subr.mxu0 %v175
    %522 = vmatpush1.msra.mxu0 %v174
    %523 = vmatprep.subr.mxu0 %v177
    %524 = vmatpush1.msra.mxu0 %v176
    %525 = vmatprep.subr.mxu0 %v179
    %526 = vmatpush1.msra.mxu0 %v178
    %527 = vmatprep.subr.mxu0 0.0
    %528 = vmatpush1.msra.mxu0 0.0
    %529 = vmatprep.subr.mxu0 0.0
    %530 = vmatpush1.msra.mxu0 0.0
    %531 = vmatprep.subr.mxu0 0.0
    %532 = vmatpush1.msra.mxu0 0.0
    %533 = vmatprep.subr.mxu0 0.0
    %534 = vmatpush1.msra.mxu0 0.0
    %535 = vmatprep.subr.mxu0 0.0
    %536 = vmatpush1.msra.mxu0 0.0
    %537 = vmatprep.subr.mxu0 0.0
    %538 = vmatpush1.msra.mxu0 0.0
    %539 = vmatprep.subr.mxu0 0.0
    %540 = vmatpush1.msra.mxu0 0.0
    %541 = vmatprep.subr.mxu0 0.0
    %542 = vmatpush1.msra.mxu0 0.0
    %543 = vmatprep.subr.mxu0 0.0
    %544 = vmatpush1.msra.mxu0 0.0
    %545 = vmatprep.subr.mxu0 0.0
    %546 = vmatpush1.msra.mxu0 0.0
    %547 = vmatprep.subr.mxu0 0.0
    %548 = vmatpush1.msra.mxu0 0.0
    %549 = vmatprep.subr.mxu0 0.0
    %550 = vmatpush1.msra.mxu0 0.0
    %551 = vmatprep.subr.mxu0 0.0
    %552 = vmatpush1.msra.mxu0 0.0
    %553 = vmatprep.subr.mxu0 0.0
    %554 = vmatpush1.msra.mxu0 0.0
    %555 = vmatprep.subr.mxu0 0.0
    %556 = vmatpush1.msra.mxu0 0.0
    %557 = vmatprep.subr.mxu0 0.0
    %558 = vmatpush1.msra.mxu0 0.0
    %559 = vmatprep.subr.mxu0 0.0
    %560 = vmatpush1.msra.mxu0 0.0
    %561 = vmatprep.subr.mxu0 0.0
    %562 = vmatpush1.msra.mxu0 0.0
    %563 = vmatprep.subr.mxu0 0.0
    %564 = vmatpush1.msra.mxu0 0.0
    %565 = vmatprep.subr.mxu0 0.0
    %566 = vmatpush1.msra.mxu0 0.0
    %567 = vmatprep.subr.mxu0 0.0
    %568 = vmatpush1.msra.mxu0 0.0
    %569 = vmatprep.subr.mxu0 0.0
    %570 = vmatpush1.msra.mxu0 0.0
    %571 = vmatprep.subr.mxu0 0.0
    %572 = vmatpush1.msra.mxu0 0.0
    %573 = vmatprep.subr.mxu0 0.0
    %574 = vmatpush1.msra.mxu0 0.0
    %575 = vmatprep.mubr.f32.mxu0 0.0
    %576 = vmatmul.mubr.f32.gmra.mrb[0].mxu0 %v509
    %v577 = vpop.f32.mrb[0].mxu0
    %v578 = vadd.f32 0.0, %v577
    %v579 = vpop.f32.mrb[0].mxu0
    %v580 = vadd.f32 0.0, %v579
    %581 = vdwg.mxu0
    %v583 = vrot.slane %v578, 2
    %v585 = vadd.f32 %v154, %v583
    %v586 = vxor.u32 %v585, 2147483648
    %v587 = vmul.f32 %v586, 1.442695
    %v588 = vpow.pop %v587
    %v589 = vadd.f32 %v588, 1.0
    %v590 = vrcp.pop %v589
    %v591 = vmul.f32 1.0, %v590
    %v592 = vadd.f32 %v580, %v268
    %v594 = vrot.slane %v592, 2
    %v596 = vmul.f32 %v591, %v594
    %v597 = vadd.f32 %v156, %v596
    %v598 = vtanh.pop %v597
    %v599 = vsub.f32 1.0, %v591
    %601 = vrot.lane.b32.xlu0 %v598, 64
    %v602 = vpop.permute.xlu0 %601
    %v604 = vmul.f32 %v599, %v602
    %v605 = vrot.slane %v499, 6
    %v607 = vmul.f32 %v591, %v605
    %v608 = vadd.f32 %v604, %v607
    %610 = vrot.lane.b32.xlu0 %v608, 64
    %v611 = vpop.permute.xlu0 %610
    %vm613 = vcmask 523270
    %614 = vst.msk [vmem:[#allocation2] sm:$0xc0] %vm613, %v611
    %v615 = vrot.slane %v608, 6
    %616 = vrot.lane.b32.xlu0 %v615, 64
    %v617 = vpop.permute.xlu0 %616
    %v618 = vsel %vm182, %v617, 0
    %620 = vmatprep.subr.mxu0 %v165
    %621 = vmatpush1.msra.mxu0 %v164
    %622 = vmatprep.subr.mxu0 %v167
    %623 = vmatpush1.msra.mxu0 %v166
    %624 = vmatprep.subr.mxu0 %v169
    %625 = vmatpush1.msra.mxu0 %v168
    %626 = vmatprep.subr.mxu0 %v171
    %627 = vmatpush1.msra.mxu0 %v170
    %628 = vmatprep.subr.mxu0 %v173
    %629 = vmatpush1.msra.mxu0 %v172
    %630 = vmatprep.subr.mxu0 %v175
    %631 = vmatpush1.msra.mxu0 %v174
    %632 = vmatprep.subr.mxu0 %v177
    %633 = vmatpush1.msra.mxu0 %v176
    %634 = vmatprep.subr.mxu0 %v179
    %635 = vmatpush1.msra.mxu0 %v178
    %636 = vmatprep.subr.mxu0 0.0
    %637 = vmatpush1.msra.mxu0 0.0
    %638 = vmatprep.subr.mxu0 0.0
    %639 = vmatpush1.msra.mxu0 0.0
    %640 = vmatprep.subr.mxu0 0.0
    %641 = vmatpush1.msra.mxu0 0.0
    %642 = vmatprep.subr.mxu0 0.0
    %643 = vmatpush1.msra.mxu0 0.0
    %644 = vmatprep.subr.mxu0 0.0
    %645 = vmatpush1.msra.mxu0 0.0
    %646 = vmatprep.subr.mxu0 0.0
    %647 = vmatpush1.msra.mxu0 0.0
    %648 = vmatprep.subr.mxu0 0.0
    %649 = vmatpush1.msra.mxu0 0.0
    %650 = vmatprep.subr.mxu0 0.0
    %651 = vmatpush1.msra.mxu0 0.0
    %652 = vmatprep.subr.mxu0 0.0
    %653 = vmatpush1.msra.mxu0 0.0
    %654 = vmatprep.subr.mxu0 0.0
    %655 = vmatpush1.msra.mxu0 0.0
    %656 = vmatprep.subr.mxu0 0.0
    %657 = vmatpush1.msra.mxu0 0.0
    %658 = vmatprep.subr.mxu0 0.0
    %659 = vmatpush1.msra.mxu0 0.0
    %660 = vmatprep.subr.mxu0 0.0
    %661 = vmatpush1.msra.mxu0 0.0
    %662 = vmatprep.subr.mxu0 0.0
    %663 = vmatpush1.msra.mxu0 0.0
    %664 = vmatprep.subr.mxu0 0.0
    %665 = vmatpush1.msra.mxu0 0.0
    %666 = vmatprep.subr.mxu0 0.0
    %667 = vmatpush1.msra.mxu0 0.0
    %668 = vmatprep.subr.mxu0 0.0
    %669 = vmatpush1.msra.mxu0 0.0
    %670 = vmatprep.subr.mxu0 0.0
    %671 = vmatpush1.msra.mxu0 0.0
    %672 = vmatprep.subr.mxu0 0.0
    %673 = vmatpush1.msra.mxu0 0.0
    %674 = vmatprep.subr.mxu0 0.0
    %675 = vmatpush1.msra.mxu0 0.0
    %676 = vmatprep.subr.mxu0 0.0
    %677 = vmatpush1.msra.mxu0 0.0
    %678 = vmatprep.subr.mxu0 0.0
    %679 = vmatpush1.msra.mxu0 0.0
    %680 = vmatprep.subr.mxu0 0.0
    %681 = vmatpush1.msra.mxu0 0.0
    %682 = vmatprep.subr.mxu0 0.0
    %683 = vmatpush1.msra.mxu0 0.0
    %684 = vmatprep.mubr.f32.mxu0 0.0
    %685 = vmatmul.mubr.f32.gmra.mrb[0].mxu0 %v618
    %v686 = vpop.f32.mrb[0].mxu0
    %v687 = vadd.f32 0.0, %v686
    %v688 = vpop.f32.mrb[0].mxu0
    %v689 = vadd.f32 0.0, %v688
    %690 = vdwg.mxu0
    %v691 = vadd.f32 %v160, %v687
    %v692 = vxor.u32 %v691, 2147483648
    %v693 = vmul.f32 %v692, 1.442695
    %v694 = vpow.pop %v693
    %v695 = vadd.f32 %v694, 1.0
    %v696 = vrcp.pop %v695
    %v697 = vmul.f32 1.0, %v696
    %v698 = vadd.f32 %v689, %v268
    %v699 = vmul.f32 %v697, %v698
    %v700 = vadd.f32 %v162, %v699
    %v701 = vtanh.pop %v700
    %v702 = vsub.f32 1.0, %v697
    %704 = vrot.lane.b32.xlu0 %v701, 64
    %v705 = vpop.permute.xlu0 %704
    %v707 = vmul.f32 %v702, %v705
    %v709 = vmul.f32 %v697, %v615
    %v710 = vadd.f32 %v707, %v709
    %712 = vrot.lane.b32.xlu0 %v710, 64
    %v713 = vpop.permute.xlu0 %712
    %715 = vst.msk [vmem:[#allocation2 + $0x8] sm:$0x3] %vm289, %v713
    %v716 = vsel %vm182, %v713, 0
    %718 = vmatprep.subr.mxu0 %v165
    %719 = vmatpush1.msra.mxu0 %v164
    %720 = vmatprep.subr.mxu0 %v167
    %721 = vmatpush1.msra.mxu0 %v166
    %722 = vmatprep.subr.mxu0 %v169
    %723 = vmatpush1.msra.mxu0 %v168
    %724 = vmatprep.subr.mxu0 %v171
    %725 = vmatpush1.msra.mxu0 %v170
    %726 = vmatprep.subr.mxu0 %v173
    %727 = vmatpush1.msra.mxu0 %v172
    %728 = vmatprep.subr.mxu0 %v175
    %729 = vmatpush1.msra.mxu0 %v174
    %730 = vmatprep.subr.mxu0 %v177
    %731 = vmatpush1.msra.mxu0 %v176
    %732 = vmatprep.subr.mxu0 %v179
    %733 = vmatpush1.msra.mxu0 %v178
    %734 = vmatprep.subr.mxu0 0.0
    %735 = vmatpush1.msra.mxu0 0.0
    %736 = vmatprep.subr.mxu0 0.0
    %737 = vmatpush1.msra.mxu0 0.0
    %738 = vmatprep.subr.mxu0 0.0
    %739 = vmatpush1.msra.mxu0 0.0
    %740 = vmatprep.subr.mxu0 0.0
    %741 = vmatpush1.msra.mxu0 0.0
    %742 = vmatprep.subr.mxu0 0.0
    %743 = vmatpush1.msra.mxu0 0.0
    %744 = vmatprep.subr.mxu0 0.0
    %745 = vmatpush1.msra.mxu0 0.0
    %746 = vmatprep.subr.mxu0 0.0
    %747 = vmatpush1.msra.mxu0 0.0
    %748 = vmatprep.subr.mxu0 0.0
    %749 = vmatpush1.msra.mxu0 0.0
    %750 = vmatprep.subr.mxu0 0.0
    %751 = vmatpush1.msra.mxu0 0.0
    %752 = vmatprep.subr.mxu0 0.0
    %753 = vmatpush1.msra.mxu0 0.0
    %754 = vmatprep.subr.mxu0 0.0
    %755 = vmatpush1.msra.mxu0 0.0
    %756 = vmatprep.subr.mxu0 0.0
    %757 = vmatpush1.msra.mxu0 0.0
    %758 = vmatprep.subr.mxu0 0.0
    %759 = vmatpush1.msra.mxu0 0.0
    %760 = vmatprep.subr.mxu0 0.0
    %761 = vmatpush1.msra.mxu0 0.0
    %762 = vmatprep.subr.mxu0 0.0
    %763 = vmatpush1.msra.mxu0 0.0
    %764 = vmatprep.subr.mxu0 0.0
    %765 = vmatpush1.msra.mxu0 0.0
    %766 = vmatprep.subr.mxu0 0.0
    %767 = vmatpush1.msra.mxu0 0.0
    %768 = vmatprep.subr.mxu0 0.0
    %769 = vmatpush1.msra.mxu0 0.0
    %770 = vmatprep.subr.mxu0 0.0
    %771 = vmatpush1.msra.mxu0 0.0
    %772 = vmatprep.subr.mxu0 0.0
    %773 = vmatpush1.msra.mxu0 0.0
    %774 = vmatprep.subr.mxu0 0.0
    %775 = vmatpush1.msra.mxu0 0.0
    %776 = vmatprep.subr.mxu0 0.0
    %777 = vmatpush1.msra.mxu0 0.0
    %778 = vmatprep.subr.mxu0 0.0
    %779 = vmatpush1.msra.mxu0 0.0
    %780 = vmatprep.subr.mxu0 0.0
    %781 = vmatpush1.msra.mxu0 0.0
    %782 = vmatprep.mubr.f32.mxu0 0.0
    %783 = vmatmul.mubr.f32.gmra.mrb[0].mxu0 %v716
    %v784 = vpop.f32.mrb[0].mxu0
    %v785 = vadd.f32 0.0, %v784
    %v786 = vpop.f32.mrb[0].mxu0
    %v787 = vadd.f32 0.0, %v786
    %788 = vdwg.mxu0
    %v790 = vrot.slane %v785, 6
    %v792 = vadd.f32 %v160, %v790
    %v793 = vxor.u32 %v792, 2147483648
    %v794 = vmul.f32 %v793, 1.442695
    %v795 = vpow.pop %v794
    %v796 = vadd.f32 %v795, 1.0
    %v797 = vrcp.pop %v796
    %v798 = vmul.f32 1.0, %v797
    %v799 = vadd.f32 %v787, %v268
    %v801 = vrot.slane %v799, 6
    %v803 = vmul.f32 %v798, %v801
    %v804 = vadd.f32 %v162, %v803
    %v805 = vtanh.pop %v804
    %v806 = vsub.f32 1.0, %v798
    %808 = vrot.lane.b32.xlu0 %v805, 64
    %v809 = vpop.permute.xlu0 %808
    %v811 = vmul.f32 %v806, %v809
    %v812 = vrot.slane %v710, 6
    %v814 = vmul.f32 %v798, %v812
    %v815 = vadd.f32 %v811, %v814
    %817 = vrot.lane.b32.xlu0 %v815, 64
    %v818 = vpop.permute.xlu0 %817
    %820 = vst.msk [vmem:[#allocation2 + $0x8] sm:$0xc] %vm395, %v818
    %v821 = vrot.slane %v815, 2
    %822 = vrot.lane.b32.xlu0 %v821, 64
    %v823 = vpop.permute.xlu0 %822
    %v824 = vsel %vm182, %v823, 0
    %826 = vmatprep.subr.mxu0 %v165
    %827 = vmatpush1.msra.mxu0 %v164
    %828 = vmatprep.subr.mxu0 %v167
    %829 = vmatpush1.msra.mxu0 %v166
    %830 = vmatprep.subr.mxu0 %v169
    %831 = vmatpush1.msra.mxu0 %v168
    %832 = vmatprep.subr.mxu0 %v171
    %833 = vmatpush1.msra.mxu0 %v170
    %834 = vmatprep.subr.mxu0 %v173
    %835 = vmatpush1.msra.mxu0 %v172
    %836 = vmatprep.subr.mxu0 %v175
    %837 = vmatpush1.msra.mxu0 %v174
    %838 = vmatprep.subr.mxu0 %v177
    %839 = vmatpush1.msra.mxu0 %v176
    %840 = vmatprep.subr.mxu0 %v179
    %841 = vmatpush1.msra.mxu0 %v178
    %842 = vmatprep.subr.mxu0 0.0
    %843 = vmatpush1.msra.mxu0 0.0
    %844 = vmatprep.subr.mxu0 0.0
    %845 = vmatpush1.msra.mxu0 0.0
    %846 = vmatprep.subr.mxu0 0.0
    %847 = vmatpush1.msra.mxu0 0.0
    %848 = vmatprep.subr.mxu0 0.0
    %849 = vmatpush1.msra.mxu0 0.0
    %850 = vmatprep.subr.mxu0 0.0
    %851 = vmatpush1.msra.mxu0 0.0
    %852 = vmatprep.subr.mxu0 0.0
    %853 = vmatpush1.msra.mxu0 0.0
    %854 = vmatprep.subr.mxu0 0.0
    %855 = vmatpush1.msra.mxu0 0.0
    %856 = vmatprep.subr.mxu0 0.0
    %857 = vmatpush1.msra.mxu0 0.0
    %858 = vmatprep.subr.mxu0 0.0
    %859 = vmatpush1.msra.mxu0 0.0
    %860 = vmatprep.subr.mxu0 0.0
    %861 = vmatpush1.msra.mxu0 0.0
    %862 = vmatprep.subr.mxu0 0.0
    %863 = vmatpush1.msra.mxu0 0.0
    %864 = vmatprep.subr.mxu0 0.0
    %865 = vmatpush1.msra.mxu0 0.0
    %866 = vmatprep.subr.mxu0 0.0
    %867 = vmatpush1.msra.mxu0 0.0
    %868 = vmatprep.subr.mxu0 0.0
    %869 = vmatpush1.msra.mxu0 0.0
    %870 = vmatprep.subr.mxu0 0.0
    %871 = vmatpush1.msra.mxu0 0.0
    %872 = vmatprep.subr.mxu0 0.0
    %873 = vmatpush1.msra.mxu0 0.0
    %874 = vmatprep.subr.mxu0 0.0
    %875 = vmatpush1.msra.mxu0 0.0
    %876 = vmatprep.subr.mxu0 0.0
    %877 = vmatpush1.msra.mxu0 0.0
    %878 = vmatprep.subr.mxu0 0.0
    %879 = vmatpush1.msra.mxu0 0.0
    %880 = vmatprep.subr.mxu0 0.0
    %881 = vmatpush1.msra.mxu0 0.0
    %882 = vmatprep.subr.mxu0 0.0
    %883 = vmatpush1.msra.mxu0 0.0
    %884 = vmatprep.subr.mxu0 0.0
    %885 = vmatpush1.msra.mxu0 0.0
    %886 = vmatprep.subr.mxu0 0.0
    %887 = vmatpush1.msra.mxu0 0.0
    %888 = vmatprep.subr.mxu0 0.0
    %889 = vmatpush1.msra.mxu0 0.0
    %890 = vmatprep.mubr.f32.mxu0 0.0
    %891 = vmatmul.mubr.f32.gmra.mrb[0].mxu0 %v824
    %v892 = vpop.f32.mrb[0].mxu0
    %v893 = vadd.f32 0.0, %v892
    %v894 = vpop.f32.mrb[0].mxu0
    %v895 = vadd.f32 0.0, %v894
    %896 = vdwg.mxu0
    %v898 = vrot.slane %v893, 4
    %v900 = vadd.f32 %v160, %v898
    %v901 = vxor.u32 %v900, 2147483648
    %v902 = vmul.f32 %v901, 1.442695
    %v903 = vpow.pop %v902
    %v904 = vadd.f32 %v903, 1.0
    %v905 = vrcp.pop %v904
    %v906 = vmul.f32 1.0, %v905
    %v907 = vadd.f32 %v895, %v268
    %v909 = vrot.slane %v907, 4
    %v911 = vmul.f32 %v906, %v909
    %v912 = vadd.f32 %v162, %v911
    %v913 = vtanh.pop %v912
    %v914 = vsub.f32 1.0, %v906
    %916 = vrot.lane.b32.xlu0 %v913, 64
    %v917 = vpop.permute.xlu0 %916
    %v919 = vmul.f32 %v914, %v917
    %v920 = vrot.slane %v815, 6
    %v922 = vmul.f32 %v906, %v920
    %v923 = vadd.f32 %v919, %v922
    %925 = vrot.lane.b32.xlu0 %v923, 64
    %v926 = vpop.permute.xlu0 %925
    %928 = vst.msk [vmem:[#allocation2 + $0x8] sm:$0x30] %vm504, %v926
    %v929 = vrot.slane %v923, 4
    %930 = vrot.lane.b32.xlu0 %v929, 64
    %v931 = vpop.permute.xlu0 %930
    %v932 = vsel %vm182, %v931, 0
    %934 = vmatprep.subr.mxu0 %v165
    %935 = vmatpush1.msra.mxu0 %v164
    %936 = vmatprep.subr.mxu0 %v167
    %937 = vmatpush1.msra.mxu0 %v166
    %938 = vmatprep.subr.mxu0 %v169
    %939 = vmatpush1.msra.mxu0 %v168
    %940 = vmatprep.subr.mxu0 %v171
    %941 = vmatpush1.msra.mxu0 %v170
    %942 = vmatprep.subr.mxu0 %v173
    %943 = vmatpush1.msra.mxu0 %v172
    %944 = vmatprep.subr.mxu0 %v175
    %945 = vmatpush1.msra.mxu0 %v174
    %946 = vmatprep.subr.mxu0 %v177
    %947 = vmatpush1.msra.mxu0 %v176
    %948 = vmatprep.subr.mxu0 %v179
    %949 = vmatpush1.msra.mxu0 %v178
    %950 = vmatprep.subr.mxu0 0.0
    %951 = vmatpush1.msra.mxu0 0.0
    %952 = vmatprep.subr.mxu0 0.0
    %953 = vmatpush1.msra.mxu0 0.0
    %954 = vmatprep.subr.mxu0 0.0
    %955 = vmatpush1.msra.mxu0 0.0
    %956 = vmatprep.subr.mxu0 0.0
    %957 = vmatpush1.msra.mxu0 0.0
    %958 = vmatprep.subr.mxu0 0.0
    %959 = vmatpush1.msra.mxu0 0.0
    %960 = vmatprep.subr.mxu0 0.0
    %961 = vmatpush1.msra.mxu0 0.0
    %962 = vmatprep.subr.mxu0 0.0
    %963 = vmatpush1.msra.mxu0 0.0
    %964 = vmatprep.subr.mxu0 0.0
    %965 = vmatpush1.msra.mxu0 0.0
    %966 = vmatprep.subr.mxu0 0.0
    %967 = vmatpush1.msra.mxu0 0.0
    %968 = vmatprep.subr.mxu0 0.0
    %969 = vmatpush1.msra.mxu0 0.0
    %970 = vmatprep.subr.mxu0 0.0
    %971 = vmatpush1.msra.mxu0 0.0
    %972 = vmatprep.subr.mxu0 0.0
    %973 = vmatpush1.msra.mxu0 0.0
    %974 = vmatprep.subr.mxu0 0.0
    %975 = vmatpush1.msra.mxu0 0.0
    %976 = vmatprep.subr.mxu0 0.0
    %977 = vmatpush1.msra.mxu0 0.0
    %978 = vmatprep.subr.mxu0 0.0
    %979 = vmatpush1.msra.mxu0 0.0
    %980 = vmatprep.subr.mxu0 0.0
    %981 = vmatpush1.msra.mxu0 0.0
    %982 = vmatprep.subr.mxu0 0.0
    %983 = vmatpush1.msra.mxu0 0.0
    %984 = vmatprep.subr.mxu0 0.0
    %985 = vmatpush1.msra.mxu0 0.0
    %986 = vmatprep.subr.mxu0 0.0
    %987 = vmatpush1.msra.mxu0 0.0
    %988 = vmatprep.subr.mxu0 0.0
    %989 = vmatpush1.msra.mxu0 0.0
    %990 = vmatprep.subr.mxu0 0.0
    %991 = vmatpush1.msra.mxu0 0.0
    %992 = vmatprep.subr.mxu0 0.0
    %993 = vmatpush1.msra.mxu0 0.0
    %994 = vmatprep.subr.mxu0 0.0
    %995 = vmatpush1.msra.mxu0 0.0
    %996 = vmatprep.subr.mxu0 0.0
    %997 = vmatpush1.msra.mxu0 0.0
    %998 = vmatprep.mubr.f32.mxu0 0.0
    %999 = vmatmul.mubr.f32.gmra.mrb[0].mxu0 %v932
    %v1000 = vpop.f32.mrb[0].mxu0
    %v1001 = vadd.f32 0.0, %v1000
    %v1002 = vpop.f32.mrb[0].mxu0
    %v1003 = vadd.f32 0.0, %v1002
    %1004 = vdwg.mxu0
    %v1006 = vrot.slane %v1001, 2
    %v1008 = vadd.f32 %v160, %v1006
    %v1009 = vxor.u32 %v1008, 2147483648
    %v1010 = vmul.f32 %v1009, 1.442695
    %v1011 = vpow.pop %v1010
    %v1012 = vadd.f32 %v1011, 1.0
    %v1013 = vrcp.pop %v1012
    %v1014 = vmul.f32 1.0, %v1013
    %v1015 = vadd.f32 %v1003, %v268
    %v1017 = vrot.slane %v1015, 2
    %v1019 = vmul.f32 %v1014, %v1017
    %v1020 = vadd.f32 %v162, %v1019
    %v1021 = vtanh.pop %v1020
    %v1022 = vsub.f32 1.0, %v1014
    %1024 = vrot.lane.b32.xlu0 %v1021, 64
    %v1025 = vpop.permute.xlu0 %1024
    %v1027 = vmul.f32 %v1022, %v1025
    %v1028 = vrot.slane %v923, 6
    %v1030 = vmul.f32 %v1014, %v1028
    %v1031 = vadd.f32 %v1027, %v1030
    %1033 = vrot.lane.b32.xlu0 %v1031, 64
    %v1034 = vpop.permute.xlu0 %1033
    %1036 = vst.msk [vmem:[#allocation2 + $0x8] sm:$0xc0] %vm613, %v1034
    %v1037 = vld [vmem:[#allocation2] sm:$0xff]
    %v1038 = vld [vmem:[#allocation2 + $0x8] sm:$0xff]
    %v1039 = vld [vmem:[%s6] sm:$0xff]
    %v1040 = vld [vmem:[%s6 + $0x8] sm:$0xff]
    %v1041 = vld [vmem:[%s6 + $0x10] sm:$0xff]
    %v1042 = vld [vmem:[%s6 + $0x18] sm:$0xff]
    %v1043 = vld [vmem:[%s6 + $0x20] sm:$0xff]
    %v1044 = vld [vmem:[%s6 + $0x28] sm:$0xff]
    %v1045 = vld [vmem:[%s6 + $0x30] sm:$0xff]
    %v1046 = vld [vmem:[%s6 + $0x38] sm:$0xff]
    %v1047 = vld [vmem:[%s7] sm:$0x1]
    %v1049 = vlaneseq
    %v1050 = vshrl.u32 %v1049, 7
    %v1051 = vsub.s32 0, %v1050
    %v1052 = vrot.slane %v1047, %v1051
    %v1055 = vsel %vm182, %v1037, 0
    %v1058 = vsel %vm182, %v1038, 0
    %1060 = vmatprep.subr.mxu0 0.0
    %1061 = vmatpush1.msra.mxu0 %v1039
    %1062 = vmatprep.subr.mxu0 0.0
    %1063 = vmatpush1.msra.mxu0 %v1040
    %1064 = vmatprep.subr.mxu0 0.0
    %1065 = vmatpush1.msra.mxu0 %v1041
    %1066 = vmatprep.subr.mxu0 0.0
    %1067 = vmatpush1.msra.mxu0 %v1042
    %1068 = vmatprep.subr.mxu0 0.0
    %1069 = vmatpush1.msra.mxu0 %v1043
    %1070 = vmatprep.subr.mxu0 0.0
    %1071 = vmatpush1.msra.mxu0 %v1044
    %1072 = vmatprep.subr.mxu0 0.0
    %1073 = vmatpush1.msra.mxu0 %v1045
    %1074 = vmatprep.subr.mxu0 0.0
    %1075 = vmatpush1.msra.mxu0 %v1046
    %1076 = vmatprep.subr.mxu0 0.0
    %1077 = vmatpush1.msra.mxu0 0.0
    %1078 = vmatprep.subr.mxu0 0.0
    %1079 = vmatpush1.msra.mxu0 0.0
    %1080 = vmatprep.subr.mxu0 0.0
    %1081 = vmatpush1.msra.mxu0 0.0
    %1082 = vmatprep.subr.mxu0 0.0
    %1083 = vmatpush1.msra.mxu0 0.0
    %1084 = vmatprep.subr.mxu0 0.0
    %1085 = vmatpush1.msra.mxu0 0.0
    %1086 = vmatprep.subr.mxu0 0.0
    %1087 = vmatpush1.msra.mxu0 0.0
    %1088 = vmatprep.subr.mxu0 0.0
    %1089 = vmatpush1.msra.mxu0 0.0
    %1090 = vmatprep.subr.mxu0 0.0
    %1091 = vmatpush1.msra.mxu0 0.0
    %1092 = vmatprep.subr.mxu0 0.0
    %1093 = vmatpush1.msra.mxu0 0.0
    %1094 = vmatprep.subr.mxu0 0.0
    %1095 = vmatpush1.msra.mxu0 0.0
    %1096 = vmatprep.subr.mxu0 0.0
    %1097 = vmatpush1.msra.mxu0 0.0
    %1098 = vmatprep.subr.mxu0 0.0
    %1099 = vmatpush1.msra.mxu0 0.0
    %1100 = vmatprep.subr.mxu0 0.0
    %1101 = vmatpush1.msra.mxu0 0.0
    %1102 = vmatprep.subr.mxu0 0.0
    %1103 = vmatpush1.msra.mxu0 0.0
    %1104 = vmatprep.subr.mxu0 0.0
    %1105 = vmatpush1.msra.mxu0 0.0
    %1106 = vmatprep.subr.mxu0 0.0
    %1107 = vmatpush1.msra.mxu0 0.0
    %1108 = vmatprep.subr.mxu0 0.0
    %1109 = vmatpush1.msra.mxu0 0.0
    %1110 = vmatprep.subr.mxu0 0.0
    %1111 = vmatpush1.msra.mxu0 0.0
    %1112 = vmatprep.subr.mxu0 0.0
    %1113 = vmatpush1.msra.mxu0 0.0
    %1114 = vmatprep.subr.mxu0 0.0
    %1115 = vmatpush1.msra.mxu0 0.0
    %1116 = vmatprep.subr.mxu0 0.0
    %1117 = vmatpush1.msra.mxu0 0.0
    %1118 = vmatprep.subr.mxu0 0.0
    %1119 = vmatpush1.msra.mxu0 0.0
    %1120 = vmatprep.subr.mxu0 0.0
    %1121 = vmatpush1.msra.mxu0 0.0
    %1122 = vmatprep.subr.mxu0 0.0
    %1123 = vmatpush1.msra.mxu0 0.0
    %1124 = vmatprep.mubr.f32.mxu0 0.0
    %1125 = vmatmul.mubr.f32.gmra.mrb[0].mxu0 %v1055
    %v1126 = vpop.f32.mrb[0].mxu0
    %v1127 = vadd.f32 %v1052, %v1126
    %v1128 = vpop.f32.mrb[0].mxu0
    %1129 = vmatprep.mubr.f32.mxu0 0.0
    %1130 = vmatmul.mubr.f32.gmra.mrb[0].mxu0 %v1058
    %v1131 = vpop.f32.mrb[0].mxu0
    %v1132 = vadd.f32 %v1052, %v1131
    %v1133 = vpop.f32.mrb[0].mxu0
    %1134 = vdwg.mxu0
    %1135 = vst [vmem:[#allocation3] sm:$0xff] %v1127
    %1136 = vst [vmem:[#allocation3 + $0x8] sm:$0xff] %v1132
    %1137 = vst.msk [vmem:[#allocation5 - $0x6] sm:$0xc0] %vm613, %v1034
    // Predicated region
    $region34: #{tpu_custom_call.1} parent=1 // pred_check
      _
    $region35: #{tpu_custom_call.1} parent=1 // pred_check_branch
      %1139 = sbr.rel (0) target = $region37
    $region36: #{tpu_custom_call.1} parent=1 // pred_region
      %s1141 = ssub.s32 256, 256
      %1142 = vsyncadd [#allocation4], %s1141
      %s1143 = sshll.u32 [#allocation3], 4
      %s1144 = int_to_ptr.vmem [resolvable:$true] %s1143
      %1149 = dma.vmem_to_hbm [thread:$0]  %s1144, 256, %s8, [#allocation4], 128, 128, 8
    $region37: #{tpu_custom_call.1} parent=1 // pred_fallthru
      _
    // Predicated region
    $region38: #{tpu_custom_call.1} parent=1 // pred_check
      _
    $region39: #{tpu_custom_call.1} parent=1 // pred_check_branch
      %1151 = sbr.rel (0) target = $region41
    $region40: #{tpu_custom_call.1} parent=1 // pred_region
      %s1153 = ssub.s32 32, 32
      %1154 = vsyncadd [#allocation6], %s1153
      %s1156 = sshll.u32 [#allocation5], 4
      %s1157 = int_to_ptr.vmem [resolvable:$true] %s1156
      %1159 = dma.vmem_to_hbm [thread:$0]  %s1157, 32, %s9, [#allocation6]
    $region41: #{tpu_custom_call.1} parent=1 // pred_fallthru
      _
    // Predicated region
    $region42: #{tpu_custom_call.1} parent=1 // pred_check
      _
    $region43: #{tpu_custom_call.1} parent=1 // pred_check_branch
      %1161 = sbr.rel (0) target = $region45
    $region44: #{tpu_custom_call.1} parent=1 // pred_region
      %1162 = dma.done [#allocation4], 256
    $region45: #{tpu_custom_call.1} parent=1 // pred_fallthru
      _
    // Predicated region
    $region46: #{tpu_custom_call.1} parent=1 // pred_check
      _
    $region47: #{tpu_custom_call.1} parent=1 // pred_check_branch
      %1164 = sbr.rel (0) target = $region49
    $region48: #{tpu_custom_call.1} parent=1 // pred_region
      %1165 = dma.done [#allocation6], 32
    $region49: #{tpu_custom_call.1} parent=1 // pred_fallthru
      _
    %1166 = vsyncpa [#allocation4], 1
    %1167 = vsyncpa [#allocation6], 1

</llo_original>
